<compile_context>
chip_gen: v7x
topology: tpu7x:2x2x1
jax: 0.10.0
libtpu: 0.0.40
codegen_flags: <defaults>
</compile_context>

<pallas_src>
import functools

import jax
import jax.numpy as jnp
from jax.experimental import pallas as pl
from jax.experimental.pallas import tpu as pltpu

_NEG_SLOPE = 0.1
_C1, _C2 = 32, 16            # hidden channels of conv1 / conv2
_K1, _K23 = 5, 3             # kernel sizes
_COUT_PAD = 8                # output channels padded to one sublane tile
_MXU_DTYPE = jnp.float32     # set to jnp.bfloat16 on v6e/v7x (loosen tolerance)


def _leaky(a):
    return jnp.where(a >= 0, a, _NEG_SLOPE * a)


def _shifted(x, off):
    """shifted[c, p] = x[c, p + off] (cyclic along the lane axis).

    Wrap-around only pollutes / reads padding positions that are masked to
    zero or discarded downstream, so cyclic semantics are safe here.
    """
    if off == 0:
        return x
    return jnp.roll(x, -off, axis=1)


def _tap_stack(x, Wp):
    """Stack the 9 3x3-tap shifted copies along the (8-aligned) sublane axis."""
    taps = []
    for kh in range(_K23):
        for kw in range(_K23):
            taps.append(_shifted(x, (kh - 1) * Wp + (kw - 1)))
    return jnp.concatenate(taps, axis=0)                      # (9*C, P)


def _fused_kernel(p1_ref, w1t_ref, b1_ref, w2t_ref, b2_ref, w3t_ref, b3_ref,
                  mask_ref, o_ref, *, Wp):
    mask = mask_ref[...]                                      # (1, P)

    # ---- layer 1: 5x5 conv (host im2col), NT matmul -> (32, P) ------------
    a1 = jax.lax.dot_general(
        w1t_ref[...].astype(_MXU_DTYPE), p1_ref[0].astype(_MXU_DTYPE),
        dimension_numbers=(((1,), (1,)), ((), ())),
        preferred_element_type=jnp.float32)                   # (32, P)
    s1 = _leaky(a1 + b1_ref[...]) * mask                      # zero halo/pad

    # ---- layer 2: 3x3 conv, 32 -> 16 ---------------------------------------
    patch2 = _tap_stack(s1, Wp)                               # (288, P)
    a2 = jnp.dot(w2t_ref[...].astype(_MXU_DTYPE), patch2.astype(_MXU_DTYPE),
                 preferred_element_type=jnp.float32)          # (16, P)
    s2 = _leaky(a2 + b2_ref[...]) * mask

    # ---- layer 3: 3x3 conv, 16 -> Cout (padded to 8), full-tile store ------
    patch3 = _tap_stack(s2, Wp)                               # (144, P)
    a3 = jnp.dot(w3t_ref[...].astype(_MXU_DTYPE), patch3.astype(_MXU_DTYPE),
                 preferred_element_type=jnp.float32)          # (8, P)
    o_ref[0] = (a3 + b3_ref[...]).astype(o_ref.dtype)


@functools.partial(jax.jit, static_argnames=("b_tile",))
def small_mask_net(x_nchw, params, b_tile=1):
    """Forward pass of SmallMaskNet. Input/output are NCHW like PyTorch."""
    N, Cin, H, W = x_nchw.shape
    Cout = params["b3"].shape[0]
    assert N % b_tile == 0, "b_tile must divide the batch"
    G = N // b_tile

    Hp, Wp = H + 2, W + 2                  # layer-1 output grid incl. 3x3 halo
    P = Hp * Wp
    P_pad = ((P + 127) // 128) * 128       # lane-dense (multiple of 128)
    P_blk = b_tile * P_pad                 # lanes per grid step
    K1 = _K1 * _K1 * Cin
    K1_pad = ((K1 + 127) // 128) * 128
    K3 = _K23 * _K23 * _C2

    # ---- host-side glue (XLA): layer-1 im2col over the halo-extended grid --
    ph = _K1 // 2 + 1                      # 2 (conv1 "same") + 1 (3x3 halo)
    x = jnp.transpose(x_nchw, (0, 2, 3, 1)).astype(jnp.float32)
    xp = jnp.pad(x, ((0, 0), (ph, ph), (ph, ph), (0, 0)))
    cols = [xp[:, kh:kh + Hp, kw:kw + Wp, :]
            for kh in range(_K1) for kw in range(_K1)]
    patch1 = jnp.concatenate(cols, axis=-1).reshape(N, P, K1)
    patch1 = jnp.pad(patch1, ((0, 0), (0, P_pad - P), (0, K1_pad - K1)))
    patch1 = patch1.reshape(G, P_blk, K1_pad)

    # Interior mask in the padded flat layout (zeros on the halo ring and on
    # the P -> P_pad tail); replaces all scratch zeroing.
    idx = jnp.arange(P_pad)
    row, col = idx // Wp, idx % Wp
    valid = (idx < P) & (row >= 1) & (row <= H) & (col >= 1) & (col <= W)
    mask = jnp.tile(valid.astype(jnp.float32), b_tile).reshape(1, P_blk)

    # Weights (HWIO) -> 2-D, transposed for channel-on-sublane outputs.
    # Row order: kh outer, kw inner, channel fastest (matches patch build).
    w1t = jnp.zeros((_C1, K1_pad), jnp.float32).at[:, :K1].set(
        params["w1"].reshape(K1, _C1).T)
    b1 = params["b1"].reshape(_C1, 1)
    w2t = params["w2"].reshape(_K23 * _K23 * _C1, _C2).T          # (16, 288)
    b2 = params["b2"].reshape(_C2, 1)
    w3t = jnp.zeros((_COUT_PAD, K3), jnp.float32).at[:Cout].set(
        params["w3"].reshape(K3, Cout).T)                         # (8, 144)
    b3 = jnp.zeros((_COUT_PAD, 1), jnp.float32).at[:Cout, 0].set(params["b3"])

    kern = functools.partial(_fused_kernel, Wp=Wp)
    out = pl.pallas_call(
        kern,
        out_shape=jax.ShapeDtypeStruct((G, _COUT_PAD, P_blk), x_nchw.dtype),
        grid_spec=pltpu.PrefetchScalarGridSpec(
            num_scalar_prefetch=0,
            grid=(G,),
            in_specs=[
                pl.BlockSpec((1, P_blk, K1_pad), lambda n: (n, 0, 0)),
                pl.BlockSpec(w1t.shape, lambda n: (0, 0)),
                pl.BlockSpec(b1.shape, lambda n: (0, 0)),
                pl.BlockSpec(w2t.shape, lambda n: (0, 0)),
                pl.BlockSpec(b2.shape, lambda n: (0, 0)),
                pl.BlockSpec(w3t.shape, lambda n: (0, 0)),
                pl.BlockSpec(b3.shape, lambda n: (0, 0)),
                pl.BlockSpec(mask.shape, lambda n: (0, 0)),
            ],
            out_specs=pl.BlockSpec((1, _COUT_PAD, P_blk), lambda n: (n, 0, 0)),
        ),
        compiler_params=pltpu.CompilerParams(
            dimension_semantics=("parallel",)),
    )(patch1, w1t, b1, w2t, b2, w3t, b3, mask)

    # (G, 8, b_tile*P_pad) -> (N, Cout, H, W): slice padded channels & halo.
    out = out.reshape(G, _COUT_PAD, b_tile, P_pad)
    out = jnp.transpose(out, (0, 2, 1, 3)).reshape(N, _COUT_PAD, P_pad)
    out = out[:, :Cout, :P].reshape(N, Cout, Hp, Wp)[:, :, 1:1 + H, 1:1 + W]
    return out


def init_params(key, in_ch, out_ch):
    """Deterministic init; shapes match SmallMaskNet.__init__ (HWIO layout)."""
    def conv_init(k, kh, kw, cin, cout):
        kw_key, kb_key = jax.random.split(k)
        bound = 1.0 / jnp.sqrt(cin * kh * kw)          # torch default bound
        w = jax.random.uniform(kw_key, (kh, kw, cin, cout), jnp.float32,
                               -bound, bound)
        b = jax.random.uniform(kb_key, (cout,), jnp.float32, -bound, bound)
        return w, b

    k1, k2, k3 = jax.random.split(key, 3)
    w1, b1 = conv_init(k1, _K1, _K1, in_ch, _C1)
    w2, b2 = conv_init(k2, _K23, _K23, _C1, _C2)
    w3, b3 = conv_init(k3, _K23, _K23, _C2, out_ch)
    return dict(w1=w1, b1=b1, w2=w2, b2=b2, w3=w3, b3=b3)


def reference_forward(x_nchw, params):
    """Pure-JAX reference (lax.conv) for correctness checking."""
    x = jnp.transpose(x_nchw, (0, 2, 3, 1))

    def conv(x, w, b):
        y = jax.lax.conv_general_dilated(
            x, w, window_strides=(1, 1), padding="SAME",
            dimension_numbers=("NHWC", "HWIO", "NHWC"))
        return y + b

    x = conv(x, params["w1"], params["b1"])
    x = jnp.where(x >= 0, x, _NEG_SLOPE * x)
    x = conv(x, params["w2"], params["b2"])
    x = jnp.where(x >= 0, x, _NEG_SLOPE * x)
    x = conv(x, params["w3"], params["b3"])
    return jnp.transpose(x, (0, 3, 1, 2))


if __name__ == "__main__":
    key = jax.random.PRNGKey(0)
    pkey, xkey = jax.random.split(key)

    in_ch, out_ch = 4, 2
    N, H, W = 2, 16, 16

    params = init_params(pkey, in_ch, out_ch)
    x = jax.random.normal(xkey, (N, in_ch, H, W), jnp.float32)

    out = jax.block_until_ready(small_mask_net(x, params))

    ref = jax.block_until_ready(reference_forward(x, params))
    assert out.shape == (N, out_ch, H, W)
    assert jnp.allclose(out, ref, atol=1e-4, rtol=1e-4), "mismatch vs reference"

    print("KERNEL_OK")
</pallas_src>

<mosaic_0001>
module attributes {stable_mosaic.version = 11 : i64} {
  func.func @_fused_kernel(%arg0: i32, %arg1: memref<1x384x128xf32, #tpu.memory_space<vmem>>, %arg2: memref<32x128xf32, #tpu.memory_space<vmem>>, %arg3: memref<32x1xf32, #tpu.memory_space<vmem>>, %arg4: memref<16x288xf32, #tpu.memory_space<vmem>>, %arg5: memref<16x1xf32, #tpu.memory_space<vmem>>, %arg6: memref<8x144xf32, #tpu.memory_space<vmem>>, %arg7: memref<8x1xf32, #tpu.memory_space<vmem>>, %arg8: memref<1x384xf32, #tpu.memory_space<vmem>>, %arg9: memref<1x8x384xf32, #tpu.memory_space<vmem>>) attributes {dimension_semantics = [#tpu.dimension_semantics<parallel>], iteration_bounds = array<i64: 2>, scalar_prefetch = 0 : i64, scratch_operands = 0 : i64, tpu.core_type = #tpu.core_type<tc>, window_params = [{transform_indices = @transform_0, window_bounds = array<i64: 1, 384, 128>}, {pipeline_mode = #tpu.pipeline_mode<synchronous>, transform_indices = @transform_1, window_bounds = array<i64: 32, 128>}, {pipeline_mode = #tpu.pipeline_mode<synchronous>, transform_indices = @transform_2, window_bounds = array<i64: 32, 1>}, {pipeline_mode = #tpu.pipeline_mode<synchronous>, transform_indices = @transform_3, window_bounds = array<i64: 16, 288>}, {pipeline_mode = #tpu.pipeline_mode<synchronous>, transform_indices = @transform_4, window_bounds = array<i64: 16, 1>}, {pipeline_mode = #tpu.pipeline_mode<synchronous>, transform_indices = @transform_5, window_bounds = array<i64: 8, 144>}, {pipeline_mode = #tpu.pipeline_mode<synchronous>, transform_indices = @transform_6, window_bounds = array<i64: 8, 1>}, {pipeline_mode = #tpu.pipeline_mode<synchronous>, transform_indices = @transform_7, window_bounds = array<i64: 1, 384>}, {transform_indices = @transform_8, window_bounds = array<i64: 1, 8, 384>}]} {
    %c0 = arith.constant 0 : index
    %c0_0 = arith.constant 0 : index
    %0 = vector.load %arg8[%c0, %c0_0] : memref<1x384xf32, #tpu.memory_space<vmem>>, vector<1x384xf32>
    %c0_1 = arith.constant 0 : index
    %c0_2 = arith.constant 0 : index
    %1 = vector.load %arg2[%c0_1, %c0_2] : memref<32x128xf32, #tpu.memory_space<vmem>>, vector<32x128xf32>
    %c0_3 = arith.constant 0 : index
    %c0_4 = arith.constant 0 : index
    %c0_5 = arith.constant 0 : index
    %2 = vector.load %arg1[%c0_3, %c0_4, %c0_5] : memref<1x384x128xf32, #tpu.memory_space<vmem>>, vector<1x384x128xf32>
    %3 = vector.shape_cast %2 : vector<1x384x128xf32> to vector<384x128xf32>
    %cst = arith.constant dense<0.000000e+00> : vector<32x384xf32>
    %4 = tpu.matmul %1, %3, %cst {dimension_numbers = #tpu.dot_dimension_numbers<[1], [1], [0], [0], [0, 0, 1, 0], [], []>} : vector<32x128xf32>, vector<384x128xf32>, vector<32x384xf32> -> vector<32x384xf32>
    %c0_6 = arith.constant 0 : index
    %c0_7 = arith.constant 0 : index
    %5 = vector.load %arg3[%c0_6, %c0_7] : memref<32x1xf32, #tpu.memory_space<vmem>>, vector<32x1xf32>
    %6 = vector.broadcast %5 : vector<32x1xf32> to vector<32x384xf32>
    %7 = arith.addf %4, %6 : vector<32x384xf32>
    %cst_8 = arith.constant 0.000000e+00 : f32
    %8 = vector.broadcast %cst_8 : f32 to vector<32x384xf32>
    %9 = arith.cmpf oge, %7, %8 : vector<32x384xf32>
    %cst_9 = arith.constant 1.000000e-01 : f32
    %10 = vector.broadcast %cst_9 : f32 to vector<32x384xf32>
    %11 = arith.mulf %10, %7 : vector<32x384xf32>
    %12 = arith.select %9, %7, %11 : vector<32x384xi1>, vector<32x384xf32>
    %13 = vector.broadcast %0 : vector<1x384xf32> to vector<32x384xf32>
    %14 = arith.mulf %12, %13 : vector<32x384xf32>
    %15 = vector.extract_strided_slice %14 {offsets = [0, 365], sizes = [32, 19], strides = [1, 1]} : vector<32x384xf32> to vector<32x19xf32>
    %16 = vector.extract_strided_slice %14 {offsets = [0, 0], sizes = [32, 365], strides = [1, 1]} : vector<32x384xf32> to vector<32x365xf32>
    %17 = tpu.concatenate %15, %16 in 1 : vector<32x19xf32>, vector<32x365xf32> -> vector<32x384xf32>
    %18 = vector.extract_strided_slice %14 {offsets = [0, 366], sizes = [32, 18], strides = [1, 1]} : vector<32x384xf32> to vector<32x18xf32>
    %19 = vector.extract_strided_slice %14 {offsets = [0, 0], sizes = [32, 366], strides = [1, 1]} : vector<32x384xf32> to vector<32x366xf32>
    %20 = tpu.concatenate %18, %19 in 1 : vector<32x18xf32>, vector<32x366xf32> -> vector<32x384xf32>
    %21 = vector.extract_strided_slice %14 {offsets = [0, 367], sizes = [32, 17], strides = [1, 1]} : vector<32x384xf32> to vector<32x17xf32>
    %22 = vector.extract_strided_slice %14 {offsets = [0, 0], sizes = [32, 367], strides = [1, 1]} : vector<32x384xf32> to vector<32x367xf32>
    %23 = tpu.concatenate %21, %22 in 1 : vector<32x17xf32>, vector<32x367xf32> -> vector<32x384xf32>
    %24 = vector.extract_strided_slice %14 {offsets = [0, 383], sizes = [32, 1], strides = [1, 1]} : vector<32x384xf32> to vector<32x1xf32>
    %25 = vector.extract_strided_slice %14 {offsets = [0, 0], sizes = [32, 383], strides = [1, 1]} : vector<32x384xf32> to vector<32x383xf32>
    %26 = tpu.concatenate %24, %25 in 1 : vector<32x1xf32>, vector<32x383xf32> -> vector<32x384xf32>
    %27 = vector.extract_strided_slice %14 {offsets = [0, 1], sizes = [32, 383], strides = [1, 1]} : vector<32x384xf32> to vector<32x383xf32>
    %28 = vector.extract_strided_slice %14 {offsets = [0, 0], sizes = [32, 1], strides = [1, 1]} : vector<32x384xf32> to vector<32x1xf32>
    %29 = tpu.concatenate %27, %28 in 1 : vector<32x383xf32>, vector<32x1xf32> -> vector<32x384xf32>
    %30 = vector.extract_strided_slice %14 {offsets = [0, 17], sizes = [32, 367], strides = [1, 1]} : vector<32x384xf32> to vector<32x367xf32>
    %31 = vector.extract_strided_slice %14 {offsets = [0, 0], sizes = [32, 17], strides = [1, 1]} : vector<32x384xf32> to vector<32x17xf32>
    %32 = tpu.concatenate %30, %31 in 1 : vector<32x367xf32>, vector<32x17xf32> -> vector<32x384xf32>
    %33 = vector.extract_strided_slice %14 {offsets = [0, 18], sizes = [32, 366], strides = [1, 1]} : vector<32x384xf32> to vector<32x366xf32>
    %34 = vector.extract_strided_slice %14 {offsets = [0, 0], sizes = [32, 18], strides = [1, 1]} : vector<32x384xf32> to vector<32x18xf32>
    %35 = tpu.concatenate %33, %34 in 1 : vector<32x366xf32>, vector<32x18xf32> -> vector<32x384xf32>
    %36 = vector.extract_strided_slice %14 {offsets = [0, 19], sizes = [32, 365], strides = [1, 1]} : vector<32x384xf32> to vector<32x365xf32>
    %37 = vector.extract_strided_slice %14 {offsets = [0, 0], sizes = [32, 19], strides = [1, 1]} : vector<32x384xf32> to vector<32x19xf32>
    %38 = tpu.concatenate %36, %37 in 1 : vector<32x365xf32>, vector<32x19xf32> -> vector<32x384xf32>
    %39 = tpu.concatenate %17, %20, %23, %26, %14, %29, %32, %35, %38 in 0 : vector<32x384xf32>, vector<32x384xf32>, vector<32x384xf32>, vector<32x384xf32>, vector<32x384xf32>, vector<32x384xf32>, vector<32x384xf32>, vector<32x384xf32>, vector<32x384xf32> -> vector<288x384xf32>
    %c0_10 = arith.constant 0 : index
    %c0_11 = arith.constant 0 : index
    %40 = vector.load %arg4[%c0_10, %c0_11] : memref<16x288xf32, #tpu.memory_space<vmem>>, vector<16x288xf32>
    %cst_12 = arith.constant dense<0.000000e+00> : vector<16x384xf32>
    %41 = tpu.matmul %40, %39, %cst_12 {dimension_numbers = #tpu.dot_dimension_numbers<[1], [0], [0], [1], [0, 0, 1, 1], [], []>} : vector<16x288xf32>, vector<288x384xf32>, vector<16x384xf32> -> vector<16x384xf32>
    %c0_13 = arith.constant 0 : index
    %c0_14 = arith.constant 0 : index
    %42 = vector.load %arg5[%c0_13, %c0_14] : memref<16x1xf32, #tpu.memory_space<vmem>>, vector<16x1xf32>
    %43 = vector.broadcast %42 : vector<16x1xf32> to vector<16x384xf32>
    %44 = arith.addf %41, %43 : vector<16x384xf32>
    %cst_15 = arith.constant 0.000000e+00 : f32
    %45 = vector.broadcast %cst_15 : f32 to vector<16x384xf32>
    %46 = arith.cmpf oge, %44, %45 : vector<16x384xf32>
    %cst_16 = arith.constant 1.000000e-01 : f32
    %47 = vector.broadcast %cst_16 : f32 to vector<16x384xf32>
    %48 = arith.mulf %47, %44 : vector<16x384xf32>
    %49 = arith.select %46, %44, %48 : vector<16x384xi1>, vector<16x384xf32>
    %50 = vector.broadcast %0 : vector<1x384xf32> to vector<16x384xf32>
    %51 = arith.mulf %49, %50 : vector<16x384xf32>
    %52 = vector.extract_strided_slice %51 {offsets = [0, 365], sizes = [16, 19], strides = [1, 1]} : vector<16x384xf32> to vector<16x19xf32>
    %53 = vector.extract_strided_slice %51 {offsets = [0, 0], sizes = [16, 365], strides = [1, 1]} : vector<16x384xf32> to vector<16x365xf32>
    %54 = tpu.concatenate %52, %53 in 1 : vector<16x19xf32>, vector<16x365xf32> -> vector<16x384xf32>
    %55 = vector.extract_strided_slice %51 {offsets = [0, 366], sizes = [16, 18], strides = [1, 1]} : vector<16x384xf32> to vector<16x18xf32>
    %56 = vector.extract_strided_slice %51 {offsets = [0, 0], sizes = [16, 366], strides = [1, 1]} : vector<16x384xf32> to vector<16x366xf32>
    %57 = tpu.concatenate %55, %56 in 1 : vector<16x18xf32>, vector<16x366xf32> -> vector<16x384xf32>
    %58 = vector.extract_strided_slice %51 {offsets = [0, 367], sizes = [16, 17], strides = [1, 1]} : vector<16x384xf32> to vector<16x17xf32>
    %59 = vector.extract_strided_slice %51 {offsets = [0, 0], sizes = [16, 367], strides = [1, 1]} : vector<16x384xf32> to vector<16x367xf32>
    %60 = tpu.concatenate %58, %59 in 1 : vector<16x17xf32>, vector<16x367xf32> -> vector<16x384xf32>
    %61 = vector.extract_strided_slice %51 {offsets = [0, 383], sizes = [16, 1], strides = [1, 1]} : vector<16x384xf32> to vector<16x1xf32>
    %62 = vector.extract_strided_slice %51 {offsets = [0, 0], sizes = [16, 383], strides = [1, 1]} : vector<16x384xf32> to vector<16x383xf32>
    %63 = tpu.concatenate %61, %62 in 1 : vector<16x1xf32>, vector<16x383xf32> -> vector<16x384xf32>
    %64 = vector.extract_strided_slice %51 {offsets = [0, 1], sizes = [16, 383], strides = [1, 1]} : vector<16x384xf32> to vector<16x383xf32>
    %65 = vector.extract_strided_slice %51 {offsets = [0, 0], sizes = [16, 1], strides = [1, 1]} : vector<16x384xf32> to vector<16x1xf32>
    %66 = tpu.concatenate %64, %65 in 1 : vector<16x383xf32>, vector<16x1xf32> -> vector<16x384xf32>
    %67 = vector.extract_strided_slice %51 {offsets = [0, 17], sizes = [16, 367], strides = [1, 1]} : vector<16x384xf32> to vector<16x367xf32>
    %68 = vector.extract_strided_slice %51 {offsets = [0, 0], sizes = [16, 17], strides = [1, 1]} : vector<16x384xf32> to vector<16x17xf32>
    %69 = tpu.concatenate %67, %68 in 1 : vector<16x367xf32>, vector<16x17xf32> -> vector<16x384xf32>
    %70 = vector.extract_strided_slice %51 {offsets = [0, 18], sizes = [16, 366], strides = [1, 1]} : vector<16x384xf32> to vector<16x366xf32>
    %71 = vector.extract_strided_slice %51 {offsets = [0, 0], sizes = [16, 18], strides = [1, 1]} : vector<16x384xf32> to vector<16x18xf32>
    %72 = tpu.concatenate %70, %71 in 1 : vector<16x366xf32>, vector<16x18xf32> -> vector<16x384xf32>
    %73 = vector.extract_strided_slice %51 {offsets = [0, 19], sizes = [16, 365], strides = [1, 1]} : vector<16x384xf32> to vector<16x365xf32>
    %74 = vector.extract_strided_slice %51 {offsets = [0, 0], sizes = [16, 19], strides = [1, 1]} : vector<16x384xf32> to vector<16x19xf32>
    %75 = tpu.concatenate %73, %74 in 1 : vector<16x365xf32>, vector<16x19xf32> -> vector<16x384xf32>
    %76 = tpu.concatenate %54, %57, %60, %63, %51, %66, %69, %72, %75 in 0 : vector<16x384xf32>, vector<16x384xf32>, vector<16x384xf32>, vector<16x384xf32>, vector<16x384xf32>, vector<16x384xf32>, vector<16x384xf32>, vector<16x384xf32>, vector<16x384xf32> -> vector<144x384xf32>
    %c0_17 = arith.constant 0 : index
    %c0_18 = arith.constant 0 : index
    %77 = vector.load %arg6[%c0_17, %c0_18] : memref<8x144xf32, #tpu.memory_space<vmem>>, vector<8x144xf32>
    %cst_19 = arith.constant dense<0.000000e+00> : vector<8x384xf32>
    %78 = tpu.matmul %77, %76, %cst_19 {dimension_numbers = #tpu.dot_dimension_numbers<[1], [0], [0], [1], [0, 0, 1, 1], [], []>} : vector<8x144xf32>, vector<144x384xf32>, vector<8x384xf32> -> vector<8x384xf32>
    %c0_20 = arith.constant 0 : index
    %c0_21 = arith.constant 0 : index
    %79 = vector.load %arg7[%c0_20, %c0_21] : memref<8x1xf32, #tpu.memory_space<vmem>>, vector<8x1xf32>
    %80 = vector.broadcast %79 : vector<8x1xf32> to vector<8x384xf32>
    %81 = arith.addf %78, %80 : vector<8x384xf32>
    %c0_22 = arith.constant 0 : index
    %c0_23 = arith.constant 0 : index
    %c0_24 = arith.constant 0 : index
    %82 = vector.load %arg9[%c0_22, %c0_23, %c0_24] : memref<1x8x384xf32, #tpu.memory_space<vmem>>, vector<1x8x384xf32>
    %83 = vector.shape_cast %82 : vector<1x8x384xf32> to vector<8x384xf32>
    %84 = vector.shape_cast %81 : vector<8x384xf32> to vector<1x8x384xf32>
    tpu.vector_store %arg9[%c0_22, %c0_23, %c0_24], %84 {strides = array<i32>} : memref<1x8x384xf32, #tpu.memory_space<vmem>>, vector<1x8x384xf32>,
    return
  }
  func.func @transform_0(%arg0: i32) -> (i32, i32, i32) {
    %c0_i32 = arith.constant 0 : i32
    %c0_i32_0 = arith.constant 0 : i32
    %c0_i32_1 = arith.constant 0 : i32
    return %arg0, %c0_i32, %c0_i32_0 : i32, i32, i32
  }
  func.func @transform_1(%arg0: i32) -> (i32, i32) {
    %c0_i32 = arith.constant 0 : i32
    %c0_i32_0 = arith.constant 0 : i32
    %c0_i32_1 = arith.constant 0 : i32
    return %c0_i32, %c0_i32_0 : i32, i32
  }
  func.func @transform_2(%arg0: i32) -> (i32, i32) {
    %c0_i32 = arith.constant 0 : i32
    %c0_i32_0 = arith.constant 0 : i32
    %c0_i32_1 = arith.constant 0 : i32
    return %c0_i32, %c0_i32_0 : i32, i32
  }
  func.func @transform_3(%arg0: i32) -> (i32, i32) {
    %c0_i32 = arith.constant 0 : i32
    %c0_i32_0 = arith.constant 0 : i32
    %c0_i32_1 = arith.constant 0 : i32
    return %c0_i32, %c0_i32_0 : i32, i32
  }
  func.func @transform_4(%arg0: i32) -> (i32, i32) {
    %c0_i32 = arith.constant 0 : i32
    %c0_i32_0 = arith.constant 0 : i32
    %c0_i32_1 = arith.constant 0 : i32
    return %c0_i32, %c0_i32_0 : i32, i32
  }
  func.func @transform_5(%arg0: i32) -> (i32, i32) {
    %c0_i32 = arith.constant 0 : i32
    %c0_i32_0 = arith.constant 0 : i32
    %c0_i32_1 = arith.constant 0 : i32
    return %c0_i32, %c0_i32_0 : i32, i32
  }
  func.func @transform_6(%arg0: i32) -> (i32, i32) {
    %c0_i32 = arith.constant 0 : i32
    %c0_i32_0 = arith.constant 0 : i32
    %c0_i32_1 = arith.constant 0 : i32
    return %c0_i32, %c0_i32_0 : i32, i32
  }
  func.func @transform_7(%arg0: i32) -> (i32, i32) {
    %c0_i32 = arith.constant 0 : i32
    %c0_i32_0 = arith.constant 0 : i32
    %c0_i32_1 = arith.constant 0 : i32
    return %c0_i32, %c0_i32_0 : i32, i32
  }
  func.func @transform_8(%arg0: i32) -> (i32, i32, i32) {
    %c0_i32 = arith.constant 0 : i32
    %c0_i32_0 = arith.constant 0 : i32
    %c0_i32_1 = arith.constant 0 : i32
    return %arg0, %c0_i32, %c0_i32_0 : i32, i32, i32
  }
}

</mosaic_0001>

<llo_original>
// kernel: small_mask_net.1
$region0: #{small_mask_net.1}
  #allocation0 [shape = 'u32[]', space=smem, size = 0x4, offset = 0x4, fixed_abs, tag = 'smem constant byte address 0x4 - core index']
  #allocation1 [shape = 'u32[144,128]{1,0:T(1,128)}', space=vmem, size = 0x12000, scoped, tag = 'internal scratch']
  %s0 = inlined_call_operand.vmem [shape: f32[2,384,128], index: 0, kind: input, shape index: {}]
  %s1 = inlined_call_operand.vmem [shape: f32[32,128], index: 1, kind: input, shape index: {}]
  %s2 = inlined_call_operand.vmem [shape: f32[32,1], index: 2, kind: input, shape index: {}]
  %s3 = inlined_call_operand.vmem [shape: f32[16,288], index: 3, kind: input, shape index: {}]
  %s4 = inlined_call_operand.vmem [shape: f32[16,1], index: 4, kind: input, shape index: {}]
  %s5 = inlined_call_operand.vmem [shape: f32[8,144], index: 5, kind: input, shape index: {}]
  %s6 = inlined_call_operand.vmem [shape: f32[8,1], index: 6, kind: input, shape index: {}]
  %s7 = inlined_call_operand.vmem [shape: f32[1,384], index: 7, kind: input, shape index: {}]
  %s8 = inlined_call_operand.vmem [shape: f32[2,8,384], index: 8, kind: output, shape index: {}]
  %s9 = sld [smem:[#allocation0]]
  $region65: #{small_mask_net.1} parent=0
    _
  %s11 = ssub.s32 1, %s9
  %s12 = scalar_select 0, %s11, %s9
  loop: start=0, step=1, limit=4
  $region2: #{small_mask_net.1} parent=0 // loop_pre_header
    _
  $region3: #{small_mask_net.1} parent=0 // loop_header
    %s14 = sphi 0, %s18
    %p15 = scmp.ge.s32.totalorder %s14, 4
    %s24 = sphi 0, %s26
    %s27 = sphi 0, %s24
    %s28 = sphi 0, %s27
    %s44 = sphi 0, %s28
    %s48 = sphi 0, %s48
    %s50 = sphi 0, %s48
    %s51 = sphi 0, %s50
    %s65 = sphi 0, %s51
    %s69 = sphi 0, %s69
    %s71 = sphi 0, %s69
    %s72 = sphi 0, %s71
    %s86 = sphi 0, %s72
    %s90 = sphi 0, %s90
    %s92 = sphi 0, %s90
    %s93 = sphi 0, %s92
    %s107 = sphi 0, %s93
    %s111 = sphi 0, %s111
    %s113 = sphi 0, %s111
    %s114 = sphi 0, %s113
    %s128 = sphi 0, %s114
    %s132 = sphi 0, %s132
    %s134 = sphi 0, %s132
    %s135 = sphi 0, %s134
    %s149 = sphi 0, %s135
    %s153 = sphi 0, %s153
    %s155 = sphi 0, %s153
    %s156 = sphi 0, %s155
    %s170 = sphi 0, %s156
    %s174 = sphi 0, %s174
    %s176 = sphi 0, %s174
    %s177 = sphi 0, %s176
    %s191 = sphi 0, %s177
    %s197 = sphi 0, %s199
    %s200 = sphi 0, %s197
    %s201 = sphi 0, %s200
    %s217 = sphi 0, %s201
  $region4: #{small_mask_net.1} parent=0 // loop_header_branch
    %17 = sbr.rel (%p15) target = $region8
  $region5: #{small_mask_net.1} parent=0 // loop_body
    %s19 = ssub.s32 %s14, 1
    %s20 = ssub.s32 %s14, 2
    %s21 = sadd.s32 %s14, 1
    %s22 = ssub.s32 %s14, %s21
    %p23 = scmp.eq.s32.totalorder %s22, 0
    %s25 = sadd.s32 %s24, 1
    %s26 = scalar_select %p23, %s24, %s25
    %p29 = pneg %p23
    %p30 = scmp.eq.s32.totalorder %s14, 1
    %p31 = por %p29, %p30
    %p32 = scmp.ne.s32.totalorder %s24, %s27
    %p33 = scmp.eq.s32.totalorder %s14, 0
    %p34 = por %p32, %p33
    %p35 = scmp.ne.s32.totalorder %s24, %s27
    %p36 = scmp.eq.s32.totalorder %s19, 1
    %p37 = por %p35, %p36
    %p38 = scmp.ne.s32.totalorder %s27, %s28
    %p39 = scmp.eq.s32.totalorder %s19, 0
    %p40 = por %p38, %p39
    %p41 = scmp.ne.s32.totalorder %s27, %s28
    %p42 = scmp.eq.s32.totalorder %s20, 1
    %p43 = por %p41, %p42
    %p45 = scmp.ne.s32.totalorder %s28, %s44
    %p46 = scmp.eq.s32.totalorder %s20, 0
    %p47 = por %p45, %p46
    %s49 = sadd.s32 %s48, 1
    %p52 = scmp.eq.s32.totalorder %s14, 1
    %p53 = scmp.ne.s32.totalorder %s48, %s50
    %p54 = scmp.eq.s32.totalorder %s14, 0
    %p55 = por %p53, %p54
    %p56 = scmp.ne.s32.totalorder %s48, %s50
    %p57 = scmp.eq.s32.totalorder %s19, 1
    %p58 = por %p56, %p57
    %p59 = scmp.ne.s32.totalorder %s50, %s51
    %p60 = scmp.eq.s32.totalorder %s19, 0
    %p61 = por %p59, %p60
    %p62 = scmp.ne.s32.totalorder %s50, %s51
    %p63 = scmp.eq.s32.totalorder %s20, 1
    %p64 = por %p62, %p63
    %p66 = scmp.ne.s32.totalorder %s51, %s65
    %p67 = scmp.eq.s32.totalorder %s20, 0
    %p68 = por %p66, %p67
    %s70 = sadd.s32 %s69, 1
    %p73 = scmp.eq.s32.totalorder %s14, 1
    %p74 = scmp.ne.s32.totalorder %s69, %s71
    %p75 = scmp.eq.s32.totalorder %s14, 0
    %p76 = por %p74, %p75
    %p77 = scmp.ne.s32.totalorder %s69, %s71
    %p78 = scmp.eq.s32.totalorder %s19, 1
    %p79 = por %p77, %p78
    %p80 = scmp.ne.s32.totalorder %s71, %s72
    %p81 = scmp.eq.s32.totalorder %s19, 0
    %p82 = por %p80, %p81
    %p83 = scmp.ne.s32.totalorder %s71, %s72
    %p84 = scmp.eq.s32.totalorder %s20, 1
    %p85 = por %p83, %p84
    %p87 = scmp.ne.s32.totalorder %s72, %s86
    %p88 = scmp.eq.s32.totalorder %s20, 0
    %p89 = por %p87, %p88
    %s91 = sadd.s32 %s90, 1
    %p94 = scmp.eq.s32.totalorder %s14, 1
    %p95 = scmp.ne.s32.totalorder %s90, %s92
    %p96 = scmp.eq.s32.totalorder %s14, 0
    %p97 = por %p95, %p96
    %p98 = scmp.ne.s32.totalorder %s90, %s92
    %p99 = scmp.eq.s32.totalorder %s19, 1
    %p100 = por %p98, %p99
    %p101 = scmp.ne.s32.totalorder %s92, %s93
    %p102 = scmp.eq.s32.totalorder %s19, 0
    %p103 = por %p101, %p102
    %p104 = scmp.ne.s32.totalorder %s92, %s93
    %p105 = scmp.eq.s32.totalorder %s20, 1
    %p106 = por %p104, %p105
    %p108 = scmp.ne.s32.totalorder %s93, %s107
    %p109 = scmp.eq.s32.totalorder %s20, 0
    %p110 = por %p108, %p109
    %s112 = sadd.s32 %s111, 1
    %p115 = scmp.eq.s32.totalorder %s14, 1
    %p116 = scmp.ne.s32.totalorder %s111, %s113
    %p117 = scmp.eq.s32.totalorder %s14, 0
    %p118 = por %p116, %p117
    %p119 = scmp.ne.s32.totalorder %s111, %s113
    %p120 = scmp.eq.s32.totalorder %s19, 1
    %p121 = por %p119, %p120
    %p122 = scmp.ne.s32.totalorder %s113, %s114
    %p123 = scmp.eq.s32.totalorder %s19, 0
    %p124 = por %p122, %p123
    %p125 = scmp.ne.s32.totalorder %s113, %s114
    %p126 = scmp.eq.s32.totalorder %s20, 1
    %p127 = por %p125, %p126
    %p129 = scmp.ne.s32.totalorder %s114, %s128
    %p130 = scmp.eq.s32.totalorder %s20, 0
    %p131 = por %p129, %p130
    %s133 = sadd.s32 %s132, 1
    %p136 = scmp.eq.s32.totalorder %s14, 1
    %p137 = scmp.ne.s32.totalorder %s132, %s134
    %p138 = scmp.eq.s32.totalorder %s14, 0
    %p139 = por %p137, %p138
    %p140 = scmp.ne.s32.totalorder %s132, %s134
    %p141 = scmp.eq.s32.totalorder %s19, 1
    %p142 = por %p140, %p141
    %p143 = scmp.ne.s32.totalorder %s134, %s135
    %p144 = scmp.eq.s32.totalorder %s19, 0
    %p145 = por %p143, %p144
    %p146 = scmp.ne.s32.totalorder %s134, %s135
    %p147 = scmp.eq.s32.totalorder %s20, 1
    %p148 = por %p146, %p147
    %p150 = scmp.ne.s32.totalorder %s135, %s149
    %p151 = scmp.eq.s32.totalorder %s20, 0
    %p152 = por %p150, %p151
    %s154 = sadd.s32 %s153, 1
    %p157 = scmp.eq.s32.totalorder %s14, 1
    %p158 = scmp.ne.s32.totalorder %s153, %s155
    %p159 = scmp.eq.s32.totalorder %s14, 0
    %p160 = por %p158, %p159
    %p161 = scmp.ne.s32.totalorder %s153, %s155
    %p162 = scmp.eq.s32.totalorder %s19, 1
    %p163 = por %p161, %p162
    %p164 = scmp.ne.s32.totalorder %s155, %s156
    %p165 = scmp.eq.s32.totalorder %s19, 0
    %p166 = por %p164, %p165
    %p167 = scmp.ne.s32.totalorder %s155, %s156
    %p168 = scmp.eq.s32.totalorder %s20, 1
    %p169 = por %p167, %p168
    %p171 = scmp.ne.s32.totalorder %s156, %s170
    %p172 = scmp.eq.s32.totalorder %s20, 0
    %p173 = por %p171, %p172
    %s175 = sadd.s32 %s174, 1
    %p178 = scmp.eq.s32.totalorder %s14, 1
    %p179 = scmp.ne.s32.totalorder %s174, %s176
    %p180 = scmp.eq.s32.totalorder %s14, 0
    %p181 = por %p179, %p180
    %p182 = scmp.ne.s32.totalorder %s174, %s176
    %p183 = scmp.eq.s32.totalorder %s19, 1
    %p184 = por %p182, %p183
    %p185 = scmp.ne.s32.totalorder %s176, %s177
    %p186 = scmp.eq.s32.totalorder %s19, 0
    %p187 = por %p185, %p186
    %p188 = scmp.ne.s32.totalorder %s176, %s177
    %p189 = scmp.eq.s32.totalorder %s20, 1
    %p190 = por %p188, %p189
    %p192 = scmp.ne.s32.totalorder %s177, %s191
    %p193 = scmp.eq.s32.totalorder %s20, 0
    %p194 = por %p192, %p193
    %s195 = ssub.s32 %s14, %s21
    %p196 = scmp.eq.s32.totalorder %s195, 0
    %s198 = sadd.s32 %s197, 1
    %s199 = scalar_select %p196, %s197, %s198
    %p202 = pneg %p196
    %p203 = scmp.eq.s32.totalorder %s14, 1
    %p204 = por %p202, %p203
    %p205 = scmp.ne.s32.totalorder %s197, %s200
    %p206 = scmp.eq.s32.totalorder %s14, 0
    %p207 = por %p205, %p206
    %p208 = scmp.ne.s32.totalorder %s197, %s200
    %p209 = scmp.eq.s32.totalorder %s19, 1
    %p210 = por %p208, %p209
    %p211 = scmp.ne.s32.totalorder %s200, %s201
    %p212 = scmp.eq.s32.totalorder %s19, 0
    %p213 = por %p211, %p212
    %p214 = scmp.ne.s32.totalorder %s200, %s201
    %p215 = scmp.eq.s32.totalorder %s20, 1
    %p216 = por %p214, %p215
    %p218 = scmp.ne.s32.totalorder %s201, %s217
    %p219 = scmp.eq.s32.totalorder %s20, 0
    %p220 = por %p218, %p219
    %p221 = scmp.le.s32.totalorder 1, %s14
    %p222 = scmp.lt.s32.totalorder %s14, 3
    %p223 = pnand %p221, %p222
    %p224 = pneg %p223
    // Predicated region
    $region9: #{small_mask_net.1} parent=5 // pred_check
      _
    $region10: #{small_mask_net.1} parent=5 // pred_check_branch
      %226 = sbr.rel (%p223) target = $region12
    $region11: #{small_mask_net.1} parent=5 // pred_region
      %s227 = ssub.s32 %s14, 1
      // Predicated region
      $region13: #{small_mask_net.1} parent=11 // pred_check
        %p228 = pneg %p61
      $region14: #{small_mask_net.1} parent=11 // pred_check_branch
        %230 = sbr.rel (%p228) target = $region16
      $region15: #{small_mask_net.1} parent=11 // pred_region
        _
      $region16: #{small_mask_net.1} parent=11 // pred_fallthru
        _
      // Predicated region
      $region17: #{small_mask_net.1} parent=11 // pred_check
        %p231 = pneg %p82
      $region18: #{small_mask_net.1} parent=11 // pred_check_branch
        %233 = sbr.rel (%p231) target = $region20
      $region19: #{small_mask_net.1} parent=11 // pred_region
        _
      $region20: #{small_mask_net.1} parent=11 // pred_fallthru
        _
      // Predicated region
      $region21: #{small_mask_net.1} parent=11 // pred_check
        %p234 = pneg %p103
      $region22: #{small_mask_net.1} parent=11 // pred_check_branch
        %236 = sbr.rel (%p234) target = $region24
      $region23: #{small_mask_net.1} parent=11 // pred_region
        _
      $region24: #{small_mask_net.1} parent=11 // pred_fallthru
        _
      // Predicated region
      $region25: #{small_mask_net.1} parent=11 // pred_check
        %p237 = pneg %p124
      $region26: #{small_mask_net.1} parent=11 // pred_check_branch
        %239 = sbr.rel (%p237) target = $region28
      $region27: #{small_mask_net.1} parent=11 // pred_region
        _
      $region28: #{small_mask_net.1} parent=11 // pred_fallthru
        _
      // Predicated region
      $region29: #{small_mask_net.1} parent=11 // pred_check
        %p240 = pneg %p145
      $region30: #{small_mask_net.1} parent=11 // pred_check_branch
        %242 = sbr.rel (%p240) target = $region32
      $region31: #{small_mask_net.1} parent=11 // pred_region
        _
      $region32: #{small_mask_net.1} parent=11 // pred_fallthru
        _
      // Predicated region
      $region33: #{small_mask_net.1} parent=11 // pred_check
        %p243 = pneg %p166
      $region34: #{small_mask_net.1} parent=11 // pred_check_branch
        %245 = sbr.rel (%p243) target = $region36
      $region35: #{small_mask_net.1} parent=11 // pred_region
        _
      $region36: #{small_mask_net.1} parent=11 // pred_fallthru
        _
      // Predicated region
      $region37: #{small_mask_net.1} parent=11 // pred_check
        %p246 = pneg %p187
      $region38: #{small_mask_net.1} parent=11 // pred_check_branch
        %248 = sbr.rel (%p246) target = $region40
      $region39: #{small_mask_net.1} parent=11 // pred_region
        _
      $region40: #{small_mask_net.1} parent=11 // pred_fallthru
        _
    $region12: #{small_mask_net.1} parent=5 // pred_fallthru
      _
    %p249 = scmp.lt.s32.totalorder %s14, 2
    // Predicated region
    $region41: #{small_mask_net.1} parent=5 // pred_check
      %p250 = pneg %p249
    $region42: #{small_mask_net.1} parent=5 // pred_check_branch
      %252 = sbr.rel (%p250) target = $region44
    $region43: #{small_mask_net.1} parent=5 // pred_region
      // Predicated region
      $region45: #{small_mask_net.1} parent=43 // pred_check
        %p253 = pneg %p34
      $region46: #{small_mask_net.1} parent=43 // pred_check_branch
        %255 = sbr.rel (%p253) target = $region48
      $region47: #{small_mask_net.1} parent=43 // pred_region
        %p256 = scmp.lt.s32.totalorder %s14, 1
        %s257 = scalar_select %p256, %s14, 1
        %s258 = smul.addr %s257, 48
        %s259 = smul.addr %s258, 8
        %s260 = scalar_lea.vmem %s0, %s259
      $region48: #{small_mask_net.1} parent=43 // pred_fallthru
        _
    $region44: #{small_mask_net.1} parent=5 // pred_fallthru
      _
    %p261 = scmp.le.s32.totalorder 1, %s14
    %p262 = scmp.lt.s32.totalorder %s14, 3
    %p263 = pnand %p261, %p262
    %p264 = pneg %p263
    // Predicated region
    $region49: #{small_mask_net.1} parent=5 // pred_check
      _
    $region50: #{small_mask_net.1} parent=5 // pred_check_branch
      %266 = sbr.rel (%p263) target = $region52
    $region51: #{small_mask_net.1} parent=5 // pred_region
      %s267 = ssub.s32 %s14, 1
      %p268 = scmp.lt.s32.totalorder %s19, 1
      %s269 = scalar_select %p268, %s19, 1
      %s270 = smul.addr %s269, 48
      %s271 = smul.addr %s270, 8
      %s272 = scalar_lea.vmem %s0, %s271
      %p273 = pneg %p40
      %p274 = pneg %p37
      %p275 = pneg %p61
      %p276 = pneg %p58
      %p277 = pneg %p82
      %p278 = pneg %p79
      %p279 = pneg %p103
      %p280 = pneg %p100
      %p281 = pneg %p124
      %p282 = pneg %p121
      %p283 = pneg %p145
      %p284 = pneg %p142
      %p285 = pneg %p166
      %p286 = pneg %p163
      %p287 = pneg %p187
      %p288 = pneg %p184
      %p289 = pneg %p213
      %p290 = pneg %p210
      %p291 = scmp.lt.s32.totalorder %s19, 1
      %s292 = scalar_select %p291, %s19, 1
      %s293 = smul.addr %s292, 3
      %s294 = smul.addr %s293, 8
      %s295 = scalar_lea.vmem %s8, %s294
      %p296 = scmp.lt.s32.totalorder %s19, 1
      %s297 = scalar_select %p296, %s19, 1
      %s298 = smul.addr %s297, 48
      %s299 = smul.addr %s298, 8
      %s300 = scalar_lea.vmem %s0, %s299
      %p301 = scmp.lt.s32.totalorder %s19, 1
      %s302 = scalar_select %p301, %s19, 1
      %s303 = smul.addr %s302, 3
      %s304 = smul.addr %s303, 8
      %s305 = scalar_lea.vmem %s8, %s304
      %v306 = vld [vmem:[%s7] sm:$0x7]
      %v307 = vld [vmem:[%s1] sm:$0xff]
      %v308 = vld [vmem:[%s1 + $0x8] sm:$0xff]
      %v309 = vld [vmem:[%s1 + $0x10] sm:$0xff]
      %v310 = vld [vmem:[%s1 + $0x18] sm:$0xff]
      %v311 = vld [vmem:[%s300] sm:$0xff]
      %v312 = vld [vmem:[%s300 + $0x8] sm:$0xff]
      %v313 = vld [vmem:[%s300 + $0x10] sm:$0xff]
      %v314 = vld [vmem:[%s300 + $0x18] sm:$0xff]
      %v315 = vld [vmem:[%s300 + $0x20] sm:$0xff]
      %v316 = vld [vmem:[%s300 + $0x28] sm:$0xff]
      %v317 = vld [vmem:[%s300 + $0x30] sm:$0xff]
      %v318 = vld [vmem:[%s300 + $0x38] sm:$0xff]
      %v319 = vld [vmem:[%s300 + $0x40] sm:$0xff]
      %v320 = vld [vmem:[%s300 + $0x48] sm:$0xff]
      %v321 = vld [vmem:[%s300 + $0x50] sm:$0xff]
      %v322 = vld [vmem:[%s300 + $0x58] sm:$0xff]
      %v323 = vld [vmem:[%s300 + $0x60] sm:$0xff]
      %v324 = vld [vmem:[%s300 + $0x68] sm:$0xff]
      %v325 = vld [vmem:[%s300 + $0x70] sm:$0xff]
      %v326 = vld [vmem:[%s300 + $0x78] sm:$0xff]
      %v327 = vld [vmem:[%s300 + $0x80] sm:$0xff]
      %v328 = vld [vmem:[%s300 + $0x88] sm:$0xff]
      %v329 = vld [vmem:[%s300 + $0x90] sm:$0xff]
      %v330 = vld [vmem:[%s300 + $0x98] sm:$0xff]
      %v331 = vld [vmem:[%s300 + $0xa0] sm:$0xff]
      %v332 = vld [vmem:[%s300 + $0xa8] sm:$0xff]
      %v333 = vld [vmem:[%s300 + $0xb0] sm:$0xff]
      %v334 = vld [vmem:[%s300 + $0xb8] sm:$0xff]
      %v335 = vld [vmem:[%s300 + $0xc0] sm:$0xff]
      %v336 = vld [vmem:[%s300 + $0xc8] sm:$0xff]
      %v337 = vld [vmem:[%s300 + $0xd0] sm:$0xff]
      %v338 = vld [vmem:[%s300 + $0xd8] sm:$0xff]
      %v339 = vld [vmem:[%s300 + $0xe0] sm:$0xff]
      %v340 = vld [vmem:[%s300 + $0xe8] sm:$0xff]
      %v341 = vld [vmem:[%s300 + $0xf0] sm:$0xff]
      %v342 = vld [vmem:[%s300 + $0xf8] sm:$0xff]
      %v343 = vld [vmem:[%s300 + $0x100] sm:$0xff]
      %v344 = vld [vmem:[%s300 + $0x108] sm:$0xff]
      %v345 = vld [vmem:[%s300 + $0x110] sm:$0xff]
      %v346 = vld [vmem:[%s300 + $0x118] sm:$0xff]
      %v347 = vld [vmem:[%s300 + $0x120] sm:$0xff]
      %v348 = vld [vmem:[%s300 + $0x128] sm:$0xff]
      %v349 = vld [vmem:[%s300 + $0x130] sm:$0xff]
      %v350 = vld [vmem:[%s300 + $0x138] sm:$0xff]
      %v351 = vld [vmem:[%s300 + $0x140] sm:$0xff]
      %v352 = vld [vmem:[%s300 + $0x148] sm:$0xff]
      %v353 = vld [vmem:[%s300 + $0x150] sm:$0xff]
      %v354 = vld [vmem:[%s300 + $0x158] sm:$0xff]
      %v355 = vld [vmem:[%s300 + $0x160] sm:$0xff]
      %v356 = vld [vmem:[%s300 + $0x168] sm:$0xff]
      %v357 = vld [vmem:[%s300 + $0x170] sm:$0xff]
      %v358 = vld [vmem:[%s300 + $0x178] sm:$0xff]
      %v359 = vld [vmem:[%s2] sm:$0xff]
      %v360 = vld [vmem:[%s2 + $0x8] sm:$0xff]
      %v361 = vld [vmem:[%s2 + $0x10] sm:$0xff]
      %v362 = vld [vmem:[%s2 + $0x18] sm:$0xff]
      %364 = vset.pattern.permute.xlu0 0
      %365 = vperm.xlu0 %364, %v359
      %v366 = vpop.permute.xlu0 %365
      %369 = vset.pattern.permute.xlu0 0
      %370 = vperm.xlu0 %369, %v360
      %v371 = vpop.permute.xlu0 %370
      %374 = vset.pattern.permute.xlu0 0
      %375 = vperm.xlu0 %374, %v361
      %v376 = vpop.permute.xlu0 %375
      %379 = vset.pattern.permute.xlu0 0
      %380 = vperm.xlu0 %379, %v362
      %v381 = vpop.permute.xlu0 %380
      %383 = vmatprep.subr.mxu0 0.0
      %384 = vmatpush1.xpose.msra.mxu0 %v311
      %385 = vmatprep.subr.mxu0 0.0
      %386 = vmatpush1.xpose.msra.mxu0 %v312
      %387 = vmatprep.subr.mxu0 0.0
      %388 = vmatpush1.xpose.msra.mxu0 %v313
      %389 = vmatprep.subr.mxu0 0.0
      %390 = vmatpush1.xpose.msra.mxu0 %v314
      %391 = vmatprep.subr.mxu0 0.0
      %392 = vmatpush1.xpose.msra.mxu0 %v315
      %393 = vmatprep.subr.mxu0 0.0
      %394 = vmatpush1.xpose.msra.mxu0 %v316
      %395 = vmatprep.subr.mxu0 0.0
      %396 = vmatpush1.xpose.msra.mxu0 %v317
      %397 = vmatprep.subr.mxu0 0.0
      %398 = vmatpush1.xpose.msra.mxu0 %v318
      %399 = vmatprep.subr.mxu0 0.0
      %400 = vmatpush1.xpose.msra.mxu0 %v319
      %401 = vmatprep.subr.mxu0 0.0
      %402 = vmatpush1.xpose.msra.mxu0 %v320
      %403 = vmatprep.subr.mxu0 0.0
      %404 = vmatpush1.xpose.msra.mxu0 %v321
      %405 = vmatprep.subr.mxu0 0.0
      %406 = vmatpush1.xpose.msra.mxu0 %v322
      %407 = vmatprep.subr.mxu0 0.0
      %408 = vmatpush1.xpose.msra.mxu0 %v323
      %409 = vmatprep.subr.mxu0 0.0
      %410 = vmatpush1.xpose.msra.mxu0 %v324
      %411 = vmatprep.subr.mxu0 0.0
      %412 = vmatpush1.xpose.msra.mxu0 %v325
      %413 = vmatprep.subr.mxu0 0.0
      %414 = vmatpush1.xpose.msra.mxu0 %v326
      %415 = vmatprep.subr.mxu0 0.0
      %416 = vmatpush1.xpose.msra.mxu0 %v327
      %417 = vmatprep.subr.mxu0 0.0
      %418 = vmatpush1.xpose.msra.mxu0 %v328
      %419 = vmatprep.subr.mxu0 0.0
      %420 = vmatpush1.xpose.msra.mxu0 %v329
      %421 = vmatprep.subr.mxu0 0.0
      %422 = vmatpush1.xpose.msra.mxu0 %v330
      %423 = vmatprep.subr.mxu0 0.0
      %424 = vmatpush1.xpose.msra.mxu0 %v331
      %425 = vmatprep.subr.mxu0 0.0
      %426 = vmatpush1.xpose.msra.mxu0 %v332
      %427 = vmatprep.subr.mxu0 0.0
      %428 = vmatpush1.xpose.msra.mxu0 %v333
      %429 = vmatprep.subr.mxu0 0.0
      %430 = vmatpush1.xpose.msra.mxu0 %v334
      %431 = vmatprep.subr.mxu0 0.0
      %432 = vmatpush1.xpose.msra.mxu0 %v335
      %433 = vmatprep.subr.mxu0 0.0
      %434 = vmatpush1.xpose.msra.mxu0 %v336
      %435 = vmatprep.subr.mxu0 0.0
      %436 = vmatpush1.xpose.msra.mxu0 %v337
      %437 = vmatprep.subr.mxu0 0.0
      %438 = vmatpush1.xpose.msra.mxu0 %v338
      %439 = vmatprep.subr.mxu0 0.0
      %440 = vmatpush1.xpose.msra.mxu0 %v339
      %441 = vmatprep.subr.mxu0 0.0
      %442 = vmatpush1.xpose.msra.mxu0 %v340
      %443 = vmatprep.subr.mxu0 0.0
      %444 = vmatpush1.xpose.msra.mxu0 %v341
      %445 = vmatprep.subr.mxu0 0.0
      %446 = vmatpush1.xpose.msra.mxu0 %v342
      %447 = vmatprep.mubr.f32.mxu0 0.0
      %448 = vmatmul.mubr.f32.gmra.mrb[0].mxu0 %v307
      %v449 = vpop.f32.mrb[0].mxu0
      %v450 = vadd.f32 %v366, %v449
      %v451 = vpop.f32.mrb[0].mxu0
      %v452 = vadd.f32 %v366, %v451
      %453 = vmatprep.mubr.f32.mxu0 0.0
      %454 = vmatmul.mubr.f32.gmra.mrb[0].mxu0 %v308
      %v455 = vpop.f32.mrb[0].mxu0
      %v456 = vadd.f32 %v371, %v455
      %v457 = vpop.f32.mrb[0].mxu0
      %v458 = vadd.f32 %v371, %v457
      %459 = vmatprep.mubr.f32.mxu0 0.0
      %460 = vmatmul.mubr.f32.gmra.mrb[0].mxu0 %v309
      %v461 = vpop.f32.mrb[0].mxu0
      %v462 = vadd.f32 %v376, %v461
      %v463 = vpop.f32.mrb[0].mxu0
      %v464 = vadd.f32 %v376, %v463
      %465 = vmatprep.mubr.f32.mxu0 0.0
      %466 = vmatmul.mubr.f32.gmra.mrb[0].mxu0 %v310
      %v467 = vpop.f32.mrb[0].mxu0
      %v468 = vadd.f32 %v381, %v467
      %v469 = vpop.f32.mrb[0].mxu0
      %v470 = vadd.f32 %v381, %v469
      %471 = vdwg.mxu0
      %472 = vmatprep.subr.mxu0 0.0
      %473 = vmatpush1.xpose.msra.mxu0 %v343
      %474 = vmatprep.subr.mxu0 0.0
      %475 = vmatpush1.xpose.msra.mxu0 %v344
      %476 = vmatprep.subr.mxu0 0.0
      %477 = vmatpush1.xpose.msra.mxu0 %v345
      %478 = vmatprep.subr.mxu0 0.0
      %479 = vmatpush1.xpose.msra.mxu0 %v346
      %480 = vmatprep.subr.mxu0 0.0
      %481 = vmatpush1.xpose.msra.mxu0 %v347
      %482 = vmatprep.subr.mxu0 0.0
      %483 = vmatpush1.xpose.msra.mxu0 %v348
      %484 = vmatprep.subr.mxu0 0.0
      %485 = vmatpush1.xpose.msra.mxu0 %v349
      %486 = vmatprep.subr.mxu0 0.0
      %487 = vmatpush1.xpose.msra.mxu0 %v350
      %488 = vmatprep.subr.mxu0 0.0
      %489 = vmatpush1.xpose.msra.mxu0 %v351
      %490 = vmatprep.subr.mxu0 0.0
      %491 = vmatpush1.xpose.msra.mxu0 %v352
      %492 = vmatprep.subr.mxu0 0.0
      %493 = vmatpush1.xpose.msra.mxu0 %v353
      %494 = vmatprep.subr.mxu0 0.0
      %495 = vmatpush1.xpose.msra.mxu0 %v354
      %496 = vmatprep.subr.mxu0 0.0
      %497 = vmatpush1.xpose.msra.mxu0 %v355
      %498 = vmatprep.subr.mxu0 0.0
      %499 = vmatpush1.xpose.msra.mxu0 %v356
      %500 = vmatprep.subr.mxu0 0.0
      %501 = vmatpush1.xpose.msra.mxu0 %v357
      %502 = vmatprep.subr.mxu0 0.0
      %503 = vmatpush1.xpose.msra.mxu0 %v358
      %504 = vmatprep.subr.mxu0 0.0
      %505 = vmatpush1.xpose.msra.mxu0 0.0
      %506 = vmatprep.subr.mxu0 0.0
      %507 = vmatpush1.xpose.msra.mxu0 0.0
      %508 = vmatprep.subr.mxu0 0.0
      %509 = vmatpush1.xpose.msra.mxu0 0.0
      %510 = vmatprep.subr.mxu0 0.0
      %511 = vmatpush1.xpose.msra.mxu0 0.0
      %512 = vmatprep.subr.mxu0 0.0
      %513 = vmatpush1.xpose.msra.mxu0 0.0
      %514 = vmatprep.subr.mxu0 0.0
      %515 = vmatpush1.xpose.msra.mxu0 0.0
      %516 = vmatprep.subr.mxu0 0.0
      %517 = vmatpush1.xpose.msra.mxu0 0.0
      %518 = vmatprep.subr.mxu0 0.0
      %519 = vmatpush1.xpose.msra.mxu0 0.0
      %520 = vmatprep.subr.mxu0 0.0
      %521 = vmatpush1.xpose.msra.mxu0 0.0
      %522 = vmatprep.subr.mxu0 0.0
      %523 = vmatpush1.xpose.msra.mxu0 0.0
      %524 = vmatprep.subr.mxu0 0.0
      %525 = vmatpush1.xpose.msra.mxu0 0.0
      %526 = vmatprep.subr.mxu0 0.0
      %527 = vmatpush1.xpose.msra.mxu0 0.0
      %528 = vmatprep.subr.mxu0 0.0
      %529 = vmatpush1.xpose.msra.mxu0 0.0
      %530 = vmatprep.subr.mxu0 0.0
      %531 = vmatpush1.xpose.msra.mxu0 0.0
      %532 = vmatprep.subr.mxu0 0.0
      %533 = vmatpush1.xpose.msra.mxu0 0.0
      %534 = vmatprep.subr.mxu0 0.0
      %535 = vmatpush1.xpose.msra.mxu0 0.0
      %536 = vmatprep.mubr.f32.mxu0 0.0
      %537 = vmatmul.mubr.f32.gmra.mrb[0].mxu0 %v307
      %v538 = vpop.f32.mrb[0].mxu0
      %v539 = vadd.f32 %v366, %v538
      %v540 = vpop.f32.mrb[0].mxu0
      %541 = vmatprep.mubr.f32.mxu0 0.0
      %542 = vmatmul.mubr.f32.gmra.mrb[0].mxu0 %v308
      %v543 = vpop.f32.mrb[0].mxu0
      %v544 = vadd.f32 %v371, %v543
      %v545 = vpop.f32.mrb[0].mxu0
      %546 = vmatprep.mubr.f32.mxu0 0.0
      %547 = vmatmul.mubr.f32.gmra.mrb[0].mxu0 %v309
      %v548 = vpop.f32.mrb[0].mxu0
      %v549 = vadd.f32 %v376, %v548
      %v550 = vpop.f32.mrb[0].mxu0
      %551 = vmatprep.mubr.f32.mxu0 0.0
      %552 = vmatmul.mubr.f32.gmra.mrb[0].mxu0 %v310
      %v553 = vpop.f32.mrb[0].mxu0
      %v554 = vadd.f32 %v381, %v553
      %v555 = vpop.f32.mrb[0].mxu0
      %556 = vdwg.mxu0
      %vm557 = vcmp.ge.f32.partialorder %v450, 0.0
      %vm558 = vcmp.ge.f32.partialorder %v452, 0.0
      %vm559 = vcmp.ge.f32.partialorder %v539, 0.0
      %vm560 = vcmp.ge.f32.partialorder %v456, 0.0
      %vm561 = vcmp.ge.f32.partialorder %v458, 0.0
      %vm562 = vcmp.ge.f32.partialorder %v544, 0.0
      %vm563 = vcmp.ge.f32.partialorder %v462, 0.0
      %vm564 = vcmp.ge.f32.partialorder %v464, 0.0
      %vm565 = vcmp.ge.f32.partialorder %v549, 0.0
      %vm566 = vcmp.ge.f32.partialorder %v468, 0.0
      %vm567 = vcmp.ge.f32.partialorder %v470, 0.0
      %vm568 = vcmp.ge.f32.partialorder %v554, 0.0
      %v569 = vmul.f32 %v450, 0.1
      %v570 = vmul.f32 %v452, 0.1
      %v571 = vmul.f32 %v539, 0.1
      %v572 = vmul.f32 %v456, 0.1
      %v573 = vmul.f32 %v458, 0.1
      %v574 = vmul.f32 %v544, 0.1
      %v575 = vmul.f32 %v462, 0.1
      %v576 = vmul.f32 %v464, 0.1
      %v577 = vmul.f32 %v549, 0.1
      %v578 = vmul.f32 %v468, 0.1
      %v579 = vmul.f32 %v470, 0.1
      %v580 = vmul.f32 %v554, 0.1
      %v581 = vsel %vm557, %v450, %v569
      %v582 = vsel %vm558, %v452, %v570
      %v583 = vsel %vm559, %v539, %v571
      %v584 = vsel %vm560, %v456, %v572
      %v585 = vsel %vm561, %v458, %v573
      %v586 = vsel %vm562, %v544, %v574
      %v587 = vsel %vm563, %v462, %v575
      %v588 = vsel %vm564, %v464, %v576
      %v589 = vsel %vm565, %v549, %v577
      %v590 = vsel %vm566, %v468, %v578
      %v591 = vsel %vm567, %v470, %v579
      %v592 = vsel %vm568, %v554, %v580
      %v594 = vlaneseq
      %v595 = vshrl.u32 %v594, 7
      %v596 = vsub.s32 0, %v595
      %v597 = vrot.slane %v306, %v596
      %v598 = vlaneseq
      %v599 = vshrl.u32 %v598, 7
      %v600 = vsub.s32 1, %v599
      %v601 = vrot.slane %v306, %v600
      %v602 = vlaneseq
      %v603 = vshrl.u32 %v602, 7
      %v604 = vsub.s32 2, %v603
      %v605 = vrot.slane %v306, %v604
      %v609 = vmul.f32 %v581, %v597
      %v610 = vmul.f32 %v582, %v601
      %v611 = vmul.f32 %v583, %v605
      %v612 = vmul.f32 %v584, %v597
      %v613 = vmul.f32 %v585, %v601
      %v614 = vmul.f32 %v586, %v605
      %v615 = vmul.f32 %v587, %v597
      %v616 = vmul.f32 %v588, %v601
      %v617 = vmul.f32 %v589, %v605
      %v618 = vmul.f32 %v590, %v597
      %v619 = vmul.f32 %v591, %v601
      %v620 = vmul.f32 %v592, %v605
      %625 = vrot.lane.b32.xlu0 %v611, 19
      %v626 = vpop.permute.xlu0 %625
      %627 = vrot.lane.b32.xlu0 %v614, 19
      %v628 = vpop.permute.xlu0 %627
      %629 = vrot.lane.b32.xlu0 %v617, 19
      %v630 = vpop.permute.xlu0 %629
      %631 = vrot.lane.b32.xlu0 %v620, 19
      %v632 = vpop.permute.xlu0 %631
      %645 = vrot.lane.b32.xlu0 %v609, 19
      %v646 = vpop.permute.xlu0 %645
      %647 = vrot.lane.b32.xlu0 %v610, 19
      %v648 = vpop.permute.xlu0 %647
      %649 = vrot.lane.b32.xlu0 %v612, 19
      %v650 = vpop.permute.xlu0 %649
      %651 = vrot.lane.b32.xlu0 %v613, 19
      %v652 = vpop.permute.xlu0 %651
      %653 = vrot.lane.b32.xlu0 %v615, 19
      %v654 = vpop.permute.xlu0 %653
      %655 = vrot.lane.b32.xlu0 %v616, 19
      %v656 = vpop.permute.xlu0 %655
      %657 = vrot.lane.b32.xlu0 %v618, 19
      %v658 = vpop.permute.xlu0 %657
      %659 = vrot.lane.b32.xlu0 %v619, 19
      %v660 = vpop.permute.xlu0 %659
      %vm661 = vcmask 154624
      %v662 = vsel %vm661, %v646, %v648
      %v663 = vsel %vm661, %v648, %v626
      %v664 = vsel %vm661, %v650, %v652
      %v665 = vsel %vm661, %v652, %v628
      %v666 = vsel %vm661, %v654, %v656
      %v667 = vsel %vm661, %v656, %v630
      %v668 = vsel %vm661, %v658, %v660
      %v669 = vsel %vm661, %v660, %v632
      %v682 = vsel %vm661, %v626, %v646
      %v683 = vsel %vm661, %v628, %v650
      %v684 = vsel %vm661, %v630, %v654
      %v685 = vsel %vm661, %v632, %v658
      %686 = vrot.lane.b32.xlu0 %v611, 18
      %v687 = vpop.permute.xlu0 %686
      %688 = vrot.lane.b32.xlu0 %v614, 18
      %v689 = vpop.permute.xlu0 %688
      %690 = vrot.lane.b32.xlu0 %v617, 18
      %v691 = vpop.permute.xlu0 %690
      %692 = vrot.lane.b32.xlu0 %v620, 18
      %v693 = vpop.permute.xlu0 %692
      %698 = vrot.lane.b32.xlu0 %v609, 18
      %v699 = vpop.permute.xlu0 %698
      %700 = vrot.lane.b32.xlu0 %v610, 18
      %v701 = vpop.permute.xlu0 %700
      %702 = vrot.lane.b32.xlu0 %v612, 18
      %v703 = vpop.permute.xlu0 %702
      %704 = vrot.lane.b32.xlu0 %v613, 18
      %v705 = vpop.permute.xlu0 %704
      %706 = vrot.lane.b32.xlu0 %v615, 18
      %v707 = vpop.permute.xlu0 %706
      %708 = vrot.lane.b32.xlu0 %v616, 18
      %v709 = vpop.permute.xlu0 %708
      %710 = vrot.lane.b32.xlu0 %v618, 18
      %v711 = vpop.permute.xlu0 %710
      %712 = vrot.lane.b32.xlu0 %v619, 18
      %v713 = vpop.permute.xlu0 %712
      %vm714 = vcmask 146432
      %v715 = vsel %vm714, %v699, %v701
      %v716 = vsel %vm714, %v701, %v687
      %v717 = vsel %vm714, %v703, %v705
      %v718 = vsel %vm714, %v705, %v689
      %v719 = vsel %vm714, %v707, %v709
      %v720 = vsel %vm714, %v709, %v691
      %v721 = vsel %vm714, %v711, %v713
      %v722 = vsel %vm714, %v713, %v693
      %v735 = vsel %vm714, %v687, %v699
      %v736 = vsel %vm714, %v689, %v703
      %v737 = vsel %vm714, %v691, %v707
      %v738 = vsel %vm714, %v693, %v711
      %739 = vrot.lane.b32.xlu0 %v611, 17
      %v740 = vpop.permute.xlu0 %739
      %741 = vrot.lane.b32.xlu0 %v614, 17
      %v742 = vpop.permute.xlu0 %741
      %743 = vrot.lane.b32.xlu0 %v617, 17
      %v744 = vpop.permute.xlu0 %743
      %745 = vrot.lane.b32.xlu0 %v620, 17
      %v746 = vpop.permute.xlu0 %745
      %751 = vrot.lane.b32.xlu0 %v609, 17
      %v752 = vpop.permute.xlu0 %751
      %753 = vrot.lane.b32.xlu0 %v610, 17
      %v754 = vpop.permute.xlu0 %753
      %755 = vrot.lane.b32.xlu0 %v612, 17
      %v756 = vpop.permute.xlu0 %755
      %757 = vrot.lane.b32.xlu0 %v613, 17
      %v758 = vpop.permute.xlu0 %757
      %759 = vrot.lane.b32.xlu0 %v615, 17
      %v760 = vpop.permute.xlu0 %759
      %761 = vrot.lane.b32.xlu0 %v616, 17
      %v762 = vpop.permute.xlu0 %761
      %763 = vrot.lane.b32.xlu0 %v618, 17
      %v764 = vpop.permute.xlu0 %763
      %765 = vrot.lane.b32.xlu0 %v619, 17
      %v766 = vpop.permute.xlu0 %765
      %vm767 = vcmask 138240
      %v768 = vsel %vm767, %v752, %v754
      %v769 = vsel %vm767, %v754, %v740
      %v770 = vsel %vm767, %v756, %v758
      %v771 = vsel %vm767, %v758, %v742
      %v772 = vsel %vm767, %v760, %v762
      %v773 = vsel %vm767, %v762, %v744
      %v774 = vsel %vm767, %v764, %v766
      %v775 = vsel %vm767, %v766, %v746
      %v788 = vsel %vm767, %v740, %v752
      %v789 = vsel %vm767, %v742, %v756
      %v790 = vsel %vm767, %v744, %v760
      %v791 = vsel %vm767, %v746, %v764
      %792 = vrot.lane.b32.xlu0 %v611, 1
      %v793 = vpop.permute.xlu0 %792
      %794 = vrot.lane.b32.xlu0 %v614, 1
      %v795 = vpop.permute.xlu0 %794
      %796 = vrot.lane.b32.xlu0 %v617, 1
      %v797 = vpop.permute.xlu0 %796
      %798 = vrot.lane.b32.xlu0 %v620, 1
      %v799 = vpop.permute.xlu0 %798
      %804 = vrot.lane.b32.xlu0 %v609, 1
      %v805 = vpop.permute.xlu0 %804
      %806 = vrot.lane.b32.xlu0 %v610, 1
      %v807 = vpop.permute.xlu0 %806
      %808 = vrot.lane.b32.xlu0 %v612, 1
      %v809 = vpop.permute.xlu0 %808
      %810 = vrot.lane.b32.xlu0 %v613, 1
      %v811 = vpop.permute.xlu0 %810
      %812 = vrot.lane.b32.xlu0 %v615, 1
      %v813 = vpop.permute.xlu0 %812
      %814 = vrot.lane.b32.xlu0 %v616, 1
      %v815 = vpop.permute.xlu0 %814
      %816 = vrot.lane.b32.xlu0 %v618, 1
      %v817 = vpop.permute.xlu0 %816
      %818 = vrot.lane.b32.xlu0 %v619, 1
      %v819 = vpop.permute.xlu0 %818
      %vm820 = vcmask 7168
      %v821 = vsel %vm820, %v805, %v807
      %v822 = vsel %vm820, %v807, %v793
      %v823 = vsel %vm820, %v809, %v811
      %v824 = vsel %vm820, %v811, %v795
      %v825 = vsel %vm820, %v813, %v815
      %v826 = vsel %vm820, %v815, %v797
      %v827 = vsel %vm820, %v817, %v819
      %v828 = vsel %vm820, %v819, %v799
      %v841 = vsel %vm820, %v793, %v805
      %v842 = vsel %vm820, %v795, %v809
      %v843 = vsel %vm820, %v797, %v813
      %v844 = vsel %vm820, %v799, %v817
      %845 = vrot.lane.b32.xlu0 %v609, 127
      %v846 = vpop.permute.xlu0 %845
      %847 = vrot.lane.b32.xlu0 %v610, 127
      %v848 = vpop.permute.xlu0 %847
      %849 = vrot.lane.b32.xlu0 %v611, 127
      %v850 = vpop.permute.xlu0 %849
      %851 = vrot.lane.b32.xlu0 %v612, 127
      %v852 = vpop.permute.xlu0 %851
      %853 = vrot.lane.b32.xlu0 %v613, 127
      %v854 = vpop.permute.xlu0 %853
      %855 = vrot.lane.b32.xlu0 %v614, 127
      %v856 = vpop.permute.xlu0 %855
      %857 = vrot.lane.b32.xlu0 %v615, 127
      %v858 = vpop.permute.xlu0 %857
      %859 = vrot.lane.b32.xlu0 %v616, 127
      %v860 = vpop.permute.xlu0 %859
      %861 = vrot.lane.b32.xlu0 %v617, 127
      %v862 = vpop.permute.xlu0 %861
      %863 = vrot.lane.b32.xlu0 %v618, 127
      %v864 = vpop.permute.xlu0 %863
      %865 = vrot.lane.b32.xlu0 %v619, 127
      %v866 = vpop.permute.xlu0 %865
      %867 = vrot.lane.b32.xlu0 %v620, 127
      %v868 = vpop.permute.xlu0 %867
      %vm869 = vcmask 1039360
      %v870 = vsel %vm869, %v846, %v848
      %v871 = vsel %vm869, %v848, %v850
      %v872 = vsel %vm869, %v852, %v854
      %v873 = vsel %vm869, %v854, %v856
      %v874 = vsel %vm869, %v858, %v860
      %v875 = vsel %vm869, %v860, %v862
      %v876 = vsel %vm869, %v864, %v866
      %v877 = vsel %vm869, %v866, %v868
      %v894 = vsel %vm869, %v850, %v846
      %v895 = vsel %vm869, %v856, %v852
      %v896 = vsel %vm869, %v862, %v858
      %v897 = vsel %vm869, %v868, %v864
      %898 = vrot.lane.b32.xlu0 %v609, 111
      %v899 = vpop.permute.xlu0 %898
      %900 = vrot.lane.b32.xlu0 %v610, 111
      %v901 = vpop.permute.xlu0 %900
      %902 = vrot.lane.b32.xlu0 %v611, 111
      %v903 = vpop.permute.xlu0 %902
      %904 = vrot.lane.b32.xlu0 %v612, 111
      %v905 = vpop.permute.xlu0 %904
      %906 = vrot.lane.b32.xlu0 %v613, 111
      %v907 = vpop.permute.xlu0 %906
      %908 = vrot.lane.b32.xlu0 %v614, 111
      %v909 = vpop.permute.xlu0 %908
      %910 = vrot.lane.b32.xlu0 %v615, 111
      %v911 = vpop.permute.xlu0 %910
      %912 = vrot.lane.b32.xlu0 %v616, 111
      %v913 = vpop.permute.xlu0 %912
      %914 = vrot.lane.b32.xlu0 %v617, 111
      %v915 = vpop.permute.xlu0 %914
      %916 = vrot.lane.b32.xlu0 %v618, 111
      %v917 = vpop.permute.xlu0 %916
      %918 = vrot.lane.b32.xlu0 %v619, 111
      %v919 = vpop.permute.xlu0 %918
      %920 = vrot.lane.b32.xlu0 %v620, 111
      %v921 = vpop.permute.xlu0 %920
      %vm922 = vcmask 908288
      %v923 = vsel %vm922, %v899, %v901
      %v924 = vsel %vm922, %v901, %v903
      %v925 = vsel %vm922, %v905, %v907
      %v926 = vsel %vm922, %v907, %v909
      %v927 = vsel %vm922, %v911, %v913
      %v928 = vsel %vm922, %v913, %v915
      %v929 = vsel %vm922, %v917, %v919
      %v930 = vsel %vm922, %v919, %v921
      %v947 = vsel %vm922, %v903, %v899
      %v948 = vsel %vm922, %v909, %v905
      %v949 = vsel %vm922, %v915, %v911
      %v950 = vsel %vm922, %v921, %v917
      %951 = vrot.lane.b32.xlu0 %v609, 110
      %v952 = vpop.permute.xlu0 %951
      %953 = vrot.lane.b32.xlu0 %v610, 110
      %v954 = vpop.permute.xlu0 %953
      %955 = vrot.lane.b32.xlu0 %v611, 110
      %v956 = vpop.permute.xlu0 %955
      %957 = vrot.lane.b32.xlu0 %v612, 110
      %v958 = vpop.permute.xlu0 %957
      %959 = vrot.lane.b32.xlu0 %v613, 110
      %v960 = vpop.permute.xlu0 %959
      %961 = vrot.lane.b32.xlu0 %v614, 110
      %v962 = vpop.permute.xlu0 %961
      %963 = vrot.lane.b32.xlu0 %v615, 110
      %v964 = vpop.permute.xlu0 %963
      %965 = vrot.lane.b32.xlu0 %v616, 110
      %v966 = vpop.permute.xlu0 %965
      %967 = vrot.lane.b32.xlu0 %v617, 110
      %v968 = vpop.permute.xlu0 %967
      %969 = vrot.lane.b32.xlu0 %v618, 110
      %v970 = vpop.permute.xlu0 %969
      %971 = vrot.lane.b32.xlu0 %v619, 110
      %v972 = vpop.permute.xlu0 %971
      %973 = vrot.lane.b32.xlu0 %v620, 110
      %v974 = vpop.permute.xlu0 %973
      %vm975 = vcmask 900096
      %v976 = vsel %vm975, %v952, %v954
      %v977 = vsel %vm975, %v954, %v956
      %v978 = vsel %vm975, %v958, %v960
      %v979 = vsel %vm975, %v960, %v962
      %v980 = vsel %vm975, %v964, %v966
      %v981 = vsel %vm975, %v966, %v968
      %v982 = vsel %vm975, %v970, %v972
      %v983 = vsel %vm975, %v972, %v974
      %v1000 = vsel %vm975, %v956, %v952
      %v1001 = vsel %vm975, %v962, %v958
      %v1002 = vsel %vm975, %v968, %v964
      %v1003 = vsel %vm975, %v974, %v970
      %1004 = vrot.lane.b32.xlu0 %v609, 109
      %v1005 = vpop.permute.xlu0 %1004
      %1006 = vrot.lane.b32.xlu0 %v610, 109
      %v1007 = vpop.permute.xlu0 %1006
      %1008 = vrot.lane.b32.xlu0 %v611, 109
      %v1009 = vpop.permute.xlu0 %1008
      %1010 = vrot.lane.b32.xlu0 %v612, 109
      %v1011 = vpop.permute.xlu0 %1010
      %1012 = vrot.lane.b32.xlu0 %v613, 109
      %v1013 = vpop.permute.xlu0 %1012
      %1014 = vrot.lane.b32.xlu0 %v614, 109
      %v1015 = vpop.permute.xlu0 %1014
      %1016 = vrot.lane.b32.xlu0 %v615, 109
      %v1017 = vpop.permute.xlu0 %1016
      %1018 = vrot.lane.b32.xlu0 %v616, 109
      %v1019 = vpop.permute.xlu0 %1018
      %1020 = vrot.lane.b32.xlu0 %v617, 109
      %v1021 = vpop.permute.xlu0 %1020
      %1022 = vrot.lane.b32.xlu0 %v618, 109
      %v1023 = vpop.permute.xlu0 %1022
      %1024 = vrot.lane.b32.xlu0 %v619, 109
      %v1025 = vpop.permute.xlu0 %1024
      %1026 = vrot.lane.b32.xlu0 %v620, 109
      %v1027 = vpop.permute.xlu0 %1026
      %vm1028 = vcmask 891904
      %v1029 = vsel %vm1028, %v1005, %v1007
      %v1030 = vsel %vm1028, %v1007, %v1009
      %v1031 = vsel %vm1028, %v1011, %v1013
      %v1032 = vsel %vm1028, %v1013, %v1015
      %v1033 = vsel %vm1028, %v1017, %v1019
      %v1034 = vsel %vm1028, %v1019, %v1021
      %v1035 = vsel %vm1028, %v1023, %v1025
      %v1036 = vsel %vm1028, %v1025, %v1027
      %v1053 = vsel %vm1028, %v1009, %v1005
      %v1054 = vsel %vm1028, %v1015, %v1011
      %v1055 = vsel %vm1028, %v1021, %v1017
      %v1056 = vsel %vm1028, %v1027, %v1023
      %v1057 = vld [vmem:[%s3] sm:$0xff]
      %v1058 = vld [vmem:[%s3 + $0x8] sm:$0xff]
      %v1059 = vld [vmem:[%s3 + $0x10] sm:$0xff]
      %v1060 = vld [vmem:[%s3 + $0x18] sm:$0xff]
      %v1061 = vld [vmem:[%s3 + $0x20] sm:$0xff]
      %v1062 = vld [vmem:[%s3 + $0x28] sm:$0xff]
      %v1063 = vld [vmem:[%s4] sm:$0xff]
      %v1064 = vld [vmem:[%s4 + $0x8] sm:$0xff]
      %1066 = vset.pattern.permute.xlu0 0
      %1067 = vperm.xlu0 %1066, %v1063
      %v1068 = vpop.permute.xlu0 %1067
      %1071 = vset.pattern.permute.xlu0 0
      %1072 = vperm.xlu0 %1071, %v1064
      %v1073 = vpop.permute.xlu0 %1072
      %vm1075 = vcmask 261120
      %v1077 = vsel %vm1075, %v1059, 0
      %v1080 = vsel %vm1075, %v1062, 0
      %1082 = vmatprep.subr.mxu0 %v662
      %1083 = vmatpush1.msra.mxu0 %v682
      %1084 = vmatprep.subr.mxu0 %v664
      %1085 = vmatpush1.msra.mxu0 %v683
      %1086 = vmatprep.subr.mxu0 %v666
      %1087 = vmatpush1.msra.mxu0 %v684
      %1088 = vmatprep.subr.mxu0 %v668
      %1089 = vmatpush1.msra.mxu0 %v685
      %1090 = vmatprep.subr.mxu0 %v715
      %1091 = vmatpush1.msra.mxu0 %v735
      %1092 = vmatprep.subr.mxu0 %v717
      %1093 = vmatpush1.msra.mxu0 %v736
      %1094 = vmatprep.subr.mxu0 %v719
      %1095 = vmatpush1.msra.mxu0 %v737
      %1096 = vmatprep.subr.mxu0 %v721
      %1097 = vmatpush1.msra.mxu0 %v738
      %1098 = vmatprep.subr.mxu0 %v768
      %1099 = vmatpush1.msra.mxu0 %v788
      %1100 = vmatprep.subr.mxu0 %v770
      %1101 = vmatpush1.msra.mxu0 %v789
      %1102 = vmatprep.subr.mxu0 %v772
      %1103 = vmatpush1.msra.mxu0 %v790
      %1104 = vmatprep.subr.mxu0 %v774
      %1105 = vmatpush1.msra.mxu0 %v791
      %1106 = vmatprep.subr.mxu0 %v821
      %1107 = vmatpush1.msra.mxu0 %v841
      %1108 = vmatprep.subr.mxu0 %v823
      %1109 = vmatpush1.msra.mxu0 %v842
      %1110 = vmatprep.subr.mxu0 %v825
      %1111 = vmatpush1.msra.mxu0 %v843
      %1112 = vmatprep.subr.mxu0 %v827
      %1113 = vmatpush1.msra.mxu0 %v844
      %1114 = vmatprep.subr.mxu0 %v610
      %1115 = vmatpush1.msra.mxu0 %v609
      %1116 = vmatprep.subr.mxu0 %v613
      %1117 = vmatpush1.msra.mxu0 %v612
      %1118 = vmatprep.subr.mxu0 %v616
      %1119 = vmatpush1.msra.mxu0 %v615
      %1120 = vmatprep.subr.mxu0 %v619
      %1121 = vmatpush1.msra.mxu0 %v618
      %1122 = vmatprep.subr.mxu0 %v871
      %1123 = vmatpush1.msra.mxu0 %v870
      %1124 = vmatprep.subr.mxu0 %v873
      %1125 = vmatpush1.msra.mxu0 %v872
      %1126 = vmatprep.subr.mxu0 %v875
      %1127 = vmatpush1.msra.mxu0 %v874
      %1128 = vmatprep.subr.mxu0 %v877
      %1129 = vmatpush1.msra.mxu0 %v876
      %1130 = vmatprep.subr.mxu0 %v924
      %1131 = vmatpush1.msra.mxu0 %v923
      %1132 = vmatprep.subr.mxu0 %v926
      %1133 = vmatpush1.msra.mxu0 %v925
      %1134 = vmatprep.subr.mxu0 %v928
      %1135 = vmatpush1.msra.mxu0 %v927
      %1136 = vmatprep.subr.mxu0 %v930
      %1137 = vmatpush1.msra.mxu0 %v929
      %1138 = vmatprep.subr.mxu0 %v977
      %1139 = vmatpush1.msra.mxu0 %v976
      %1140 = vmatprep.subr.mxu0 %v979
      %1141 = vmatpush1.msra.mxu0 %v978
      %1142 = vmatprep.subr.mxu0 %v981
      %1143 = vmatpush1.msra.mxu0 %v980
      %1144 = vmatprep.subr.mxu0 %v983
      %1145 = vmatpush1.msra.mxu0 %v982
      %1146 = vmatprep.mubr.f32.mxu0 %v1058
      %1147 = vmatmul.mubr.f32.gmra.mrb[0].mxu0 %v1057
      %v1148 = vpop.f32.mrb[0].mxu0
      %v1149 = vadd.f32 %v1068, %v1148
      %v1150 = vpop.f32.mrb[0].mxu0
      %v1151 = vadd.f32 %v1068, %v1150
      %1152 = vmatprep.mubr.f32.mxu0 %v1061
      %1153 = vmatmul.mubr.f32.gmra.mrb[0].mxu0 %v1060
      %v1154 = vpop.f32.mrb[0].mxu0
      %v1155 = vadd.f32 %v1073, %v1154
      %v1156 = vpop.f32.mrb[0].mxu0
      %v1157 = vadd.f32 %v1073, %v1156
      %1158 = vdwg.mxu0
      %1159 = vmatprep.subr.mxu0 %v1030
      %1160 = vmatpush1.msra.mxu0 %v1029
      %1161 = vmatprep.subr.mxu0 %v1032
      %1162 = vmatpush1.msra.mxu0 %v1031
      %1163 = vmatprep.subr.mxu0 %v1034
      %1164 = vmatpush1.msra.mxu0 %v1033
      %1165 = vmatprep.subr.mxu0 %v1036
      %1166 = vmatpush1.msra.mxu0 %v1035
      %1167 = vmatprep.subr.mxu0 0.0
      %1168 = vmatpush1.msra.mxu0 0.0
      %1169 = vmatprep.subr.mxu0 0.0
      %1170 = vmatpush1.msra.mxu0 0.0
      %1171 = vmatprep.subr.mxu0 0.0
      %1172 = vmatpush1.msra.mxu0 0.0
      %1173 = vmatprep.subr.mxu0 0.0
      %1174 = vmatpush1.msra.mxu0 0.0
      %1175 = vmatprep.subr.mxu0 0.0
      %1176 = vmatpush1.msra.mxu0 0.0
      %1177 = vmatprep.subr.mxu0 0.0
      %1178 = vmatpush1.msra.mxu0 0.0
      %1179 = vmatprep.subr.mxu0 0.0
      %1180 = vmatpush1.msra.mxu0 0.0
      %1181 = vmatprep.subr.mxu0 0.0
      %1182 = vmatpush1.msra.mxu0 0.0
      %1183 = vmatprep.subr.mxu0 0.0
      %1184 = vmatpush1.msra.mxu0 0.0
      %1185 = vmatprep.subr.mxu0 0.0
      %1186 = vmatpush1.msra.mxu0 0.0
      %1187 = vmatprep.subr.mxu0 0.0
      %1188 = vmatpush1.msra.mxu0 0.0
      %1189 = vmatprep.subr.mxu0 0.0
      %1190 = vmatpush1.msra.mxu0 0.0
      %1191 = vmatprep.subr.mxu0 0.0
      %1192 = vmatpush1.msra.mxu0 0.0
      %1193 = vmatprep.subr.mxu0 0.0
      %1194 = vmatpush1.msra.mxu0 0.0
      %1195 = vmatprep.subr.mxu0 0.0
      %1196 = vmatpush1.msra.mxu0 0.0
      %1197 = vmatprep.subr.mxu0 0.0
      %1198 = vmatpush1.msra.mxu0 0.0
      %1199 = vmatprep.subr.mxu0 0.0
      %1200 = vmatpush1.msra.mxu0 0.0
      %1201 = vmatprep.subr.mxu0 0.0
      %1202 = vmatpush1.msra.mxu0 0.0
      %1203 = vmatprep.subr.mxu0 0.0
      %1204 = vmatpush1.msra.mxu0 0.0
      %1205 = vmatprep.subr.mxu0 0.0
      %1206 = vmatpush1.msra.mxu0 0.0
      %1207 = vmatprep.subr.mxu0 0.0
      %1208 = vmatpush1.msra.mxu0 0.0
      %1209 = vmatprep.subr.mxu0 0.0
      %1210 = vmatpush1.msra.mxu0 0.0
      %1211 = vmatprep.subr.mxu0 0.0
      %1212 = vmatpush1.msra.mxu0 0.0
      %1213 = vmatprep.subr.mxu0 0.0
      %1214 = vmatpush1.msra.mxu0 0.0
      %1215 = vmatprep.subr.mxu0 0.0
      %1216 = vmatpush1.msra.mxu0 0.0
      %1217 = vmatprep.subr.mxu0 0.0
      %1218 = vmatpush1.msra.mxu0 0.0
      %1219 = vmatprep.subr.mxu0 0.0
      %1220 = vmatpush1.msra.mxu0 0.0
      %1221 = vmatprep.subr.mxu0 0.0
      %1222 = vmatpush1.msra.mxu0 0.0
      %1223 = vmatprep.mubr.f32.mxu0 0.0
      %1224 = vmatmul.mubr.f32.gmra.mrb[0].mxu0 %v1077
      %v1225 = vpop.f32.mrb[0].mxu0
      %v1226 = vadd.f32 %v1149, %v1225
      %v1227 = vpop.f32.mrb[0].mxu0
      %v1228 = vadd.f32 %v1151, %v1227
      %1229 = vmatprep.mubr.f32.mxu0 0.0
      %1230 = vmatmul.mubr.f32.gmra.mrb[0].mxu0 %v1080
      %v1231 = vpop.f32.mrb[0].mxu0
      %v1232 = vadd.f32 %v1155, %v1231
      %v1233 = vpop.f32.mrb[0].mxu0
      %v1234 = vadd.f32 %v1157, %v1233
      %1235 = vdwg.mxu0
      %1236 = vmatprep.subr.mxu0 0.0
      %1237 = vmatpush1.msra.mxu0 %v663
      %1238 = vmatprep.subr.mxu0 0.0
      %1239 = vmatpush1.msra.mxu0 %v665
      %1240 = vmatprep.subr.mxu0 0.0
      %1241 = vmatpush1.msra.mxu0 %v667
      %1242 = vmatprep.subr.mxu0 0.0
      %1243 = vmatpush1.msra.mxu0 %v669
      %1244 = vmatprep.subr.mxu0 0.0
      %1245 = vmatpush1.msra.mxu0 %v716
      %1246 = vmatprep.subr.mxu0 0.0
      %1247 = vmatpush1.msra.mxu0 %v718
      %1248 = vmatprep.subr.mxu0 0.0
      %1249 = vmatpush1.msra.mxu0 %v720
      %1250 = vmatprep.subr.mxu0 0.0
      %1251 = vmatpush1.msra.mxu0 %v722
      %1252 = vmatprep.subr.mxu0 0.0
      %1253 = vmatpush1.msra.mxu0 %v769
      %1254 = vmatprep.subr.mxu0 0.0
      %1255 = vmatpush1.msra.mxu0 %v771
      %1256 = vmatprep.subr.mxu0 0.0
      %1257 = vmatpush1.msra.mxu0 %v773
      %1258 = vmatprep.subr.mxu0 0.0
      %1259 = vmatpush1.msra.mxu0 %v775
      %1260 = vmatprep.subr.mxu0 0.0
      %1261 = vmatpush1.msra.mxu0 %v822
      %1262 = vmatprep.subr.mxu0 0.0
      %1263 = vmatpush1.msra.mxu0 %v824
      %1264 = vmatprep.subr.mxu0 0.0
      %1265 = vmatpush1.msra.mxu0 %v826
      %1266 = vmatprep.subr.mxu0 0.0
      %1267 = vmatpush1.msra.mxu0 %v828
      %1268 = vmatprep.subr.mxu0 0.0
      %1269 = vmatpush1.msra.mxu0 %v611
      %1270 = vmatprep.subr.mxu0 0.0
      %1271 = vmatpush1.msra.mxu0 %v614
      %1272 = vmatprep.subr.mxu0 0.0
      %1273 = vmatpush1.msra.mxu0 %v617
      %1274 = vmatprep.subr.mxu0 0.0
      %1275 = vmatpush1.msra.mxu0 %v620
      %1276 = vmatprep.subr.mxu0 0.0
      %1277 = vmatpush1.msra.mxu0 %v894
      %1278 = vmatprep.subr.mxu0 0.0
      %1279 = vmatpush1.msra.mxu0 %v895
      %1280 = vmatprep.subr.mxu0 0.0
      %1281 = vmatpush1.msra.mxu0 %v896
      %1282 = vmatprep.subr.mxu0 0.0
      %1283 = vmatpush1.msra.mxu0 %v897
      %1284 = vmatprep.subr.mxu0 0.0
      %1285 = vmatpush1.msra.mxu0 %v947
      %1286 = vmatprep.subr.mxu0 0.0
      %1287 = vmatpush1.msra.mxu0 %v948
      %1288 = vmatprep.subr.mxu0 0.0
      %1289 = vmatpush1.msra.mxu0 %v949
      %1290 = vmatprep.subr.mxu0 0.0
      %1291 = vmatpush1.msra.mxu0 %v950
      %1292 = vmatprep.subr.mxu0 0.0
      %1293 = vmatpush1.msra.mxu0 %v1000
      %1294 = vmatprep.subr.mxu0 0.0
      %1295 = vmatpush1.msra.mxu0 %v1001
      %1296 = vmatprep.subr.mxu0 0.0
      %1297 = vmatpush1.msra.mxu0 %v1002
      %1298 = vmatprep.subr.mxu0 0.0
      %1299 = vmatpush1.msra.mxu0 %v1003
      %1300 = vmatprep.mubr.f32.mxu0 %v1058
      %1301 = vmatmul.mubr.f32.gmra.mrb[0].mxu0 %v1057
      %v1302 = vpop.f32.mrb[0].mxu0
      %v1303 = vadd.f32 %v1068, %v1302
      %v1304 = vpop.f32.mrb[0].mxu0
      %1305 = vmatprep.mubr.f32.mxu0 %v1061
      %1306 = vmatmul.mubr.f32.gmra.mrb[0].mxu0 %v1060
      %v1307 = vpop.f32.mrb[0].mxu0
      %v1308 = vadd.f32 %v1073, %v1307
      %v1309 = vpop.f32.mrb[0].mxu0
      %1310 = vdwg.mxu0
      %1311 = vmatprep.subr.mxu0 0.0
      %1312 = vmatpush1.msra.mxu0 %v1053
      %1313 = vmatprep.subr.mxu0 0.0
      %1314 = vmatpush1.msra.mxu0 %v1054
      %1315 = vmatprep.subr.mxu0 0.0
      %1316 = vmatpush1.msra.mxu0 %v1055
      %1317 = vmatprep.subr.mxu0 0.0
      %1318 = vmatpush1.msra.mxu0 %v1056
      %1319 = vmatprep.subr.mxu0 0.0
      %1320 = vmatpush1.msra.mxu0 0.0
      %1321 = vmatprep.subr.mxu0 0.0
      %1322 = vmatpush1.msra.mxu0 0.0
      %1323 = vmatprep.subr.mxu0 0.0
      %1324 = vmatpush1.msra.mxu0 0.0
      %1325 = vmatprep.subr.mxu0 0.0
      %1326 = vmatpush1.msra.mxu0 0.0
      %1327 = vmatprep.subr.mxu0 0.0
      %1328 = vmatpush1.msra.mxu0 0.0
      %1329 = vmatprep.subr.mxu0 0.0
      %1330 = vmatpush1.msra.mxu0 0.0
      %1331 = vmatprep.subr.mxu0 0.0
      %1332 = vmatpush1.msra.mxu0 0.0
      %1333 = vmatprep.subr.mxu0 0.0
      %1334 = vmatpush1.msra.mxu0 0.0
      %1335 = vmatprep.subr.mxu0 0.0
      %1336 = vmatpush1.msra.mxu0 0.0
      %1337 = vmatprep.subr.mxu0 0.0
      %1338 = vmatpush1.msra.mxu0 0.0
      %1339 = vmatprep.subr.mxu0 0.0
      %1340 = vmatpush1.msra.mxu0 0.0
      %1341 = vmatprep.subr.mxu0 0.0
      %1342 = vmatpush1.msra.mxu0 0.0
      %1343 = vmatprep.subr.mxu0 0.0
      %1344 = vmatpush1.msra.mxu0 0.0
      %1345 = vmatprep.subr.mxu0 0.0
      %1346 = vmatpush1.msra.mxu0 0.0
      %1347 = vmatprep.subr.mxu0 0.0
      %1348 = vmatpush1.msra.mxu0 0.0
      %1349 = vmatprep.subr.mxu0 0.0
      %1350 = vmatpush1.msra.mxu0 0.0
      %1351 = vmatprep.subr.mxu0 0.0
      %1352 = vmatpush1.msra.mxu0 0.0
      %1353 = vmatprep.subr.mxu0 0.0
      %1354 = vmatpush1.msra.mxu0 0.0
      %1355 = vmatprep.subr.mxu0 0.0
      %1356 = vmatpush1.msra.mxu0 0.0
      %1357 = vmatprep.subr.mxu0 0.0
      %1358 = vmatpush1.msra.mxu0 0.0
      %1359 = vmatprep.subr.mxu0 0.0
      %1360 = vmatpush1.msra.mxu0 0.0
      %1361 = vmatprep.subr.mxu0 0.0
      %1362 = vmatpush1.msra.mxu0 0.0
      %1363 = vmatprep.subr.mxu0 0.0
      %1364 = vmatpush1.msra.mxu0 0.0
      %1365 = vmatprep.subr.mxu0 0.0
      %1366 = vmatpush1.msra.mxu0 0.0
      %1367 = vmatprep.subr.mxu0 0.0
      %1368 = vmatpush1.msra.mxu0 0.0
      %1369 = vmatprep.subr.mxu0 0.0
      %1370 = vmatpush1.msra.mxu0 0.0
      %1371 = vmatprep.subr.mxu0 0.0
      %1372 = vmatpush1.msra.mxu0 0.0
      %1373 = vmatprep.subr.mxu0 0.0
      %1374 = vmatpush1.msra.mxu0 0.0
      %1375 = vmatprep.mubr.f32.mxu0 0.0
      %1376 = vmatmul.mubr.f32.gmra.mrb[0].mxu0 %v1077
      %v1377 = vpop.f32.mrb[0].mxu0
      %v1378 = vadd.f32 %v1303, %v1377
      %v1379 = vpop.f32.mrb[0].mxu0
      %1380 = vmatprep.mubr.f32.mxu0 0.0
      %1381 = vmatmul.mubr.f32.gmra.mrb[0].mxu0 %v1080
      %v1382 = vpop.f32.mrb[0].mxu0
      %v1383 = vadd.f32 %v1308, %v1382
      %v1384 = vpop.f32.mrb[0].mxu0
      %1385 = vdwg.mxu0
      %vm1386 = vcmp.ge.f32.partialorder %v1226, 0.0
      %vm1387 = vcmp.ge.f32.partialorder %v1228, 0.0
      %vm1388 = vcmp.ge.f32.partialorder %v1378, 0.0
      %vm1389 = vcmp.ge.f32.partialorder %v1232, 0.0
      %vm1390 = vcmp.ge.f32.partialorder %v1234, 0.0
      %vm1391 = vcmp.ge.f32.partialorder %v1383, 0.0
      %v1392 = vmul.f32 %v1226, 0.1
      %v1393 = vmul.f32 %v1228, 0.1
      %v1394 = vmul.f32 %v1378, 0.1
      %v1395 = vmul.f32 %v1232, 0.1
      %v1396 = vmul.f32 %v1234, 0.1
      %v1397 = vmul.f32 %v1383, 0.1
      %v1398 = vsel %vm1386, %v1226, %v1392
      %v1399 = vsel %vm1387, %v1228, %v1393
      %v1400 = vsel %vm1388, %v1378, %v1394
      %v1401 = vsel %vm1389, %v1232, %v1395
      %v1402 = vsel %vm1390, %v1234, %v1396
      %v1403 = vsel %vm1391, %v1383, %v1397
      %v1404 = vmul.f32 %v1398, %v597
      %v1405 = vmul.f32 %v1399, %v601
      %v1406 = vmul.f32 %v1400, %v605
      %v1407 = vmul.f32 %v1401, %v597
      %v1408 = vmul.f32 %v1402, %v601
      %v1409 = vmul.f32 %v1403, %v605
      %1412 = vrot.lane.b32.xlu0 %v1406, 19
      %v1413 = vpop.permute.xlu0 %1412
      %1414 = vrot.lane.b32.xlu0 %v1409, 19
      %v1415 = vpop.permute.xlu0 %1414
      %1422 = vrot.lane.b32.xlu0 %v1404, 19
      %v1423 = vpop.permute.xlu0 %1422
      %1424 = vrot.lane.b32.xlu0 %v1405, 19
      %v1425 = vpop.permute.xlu0 %1424
      %1426 = vrot.lane.b32.xlu0 %v1407, 19
      %v1427 = vpop.permute.xlu0 %1426
      %1428 = vrot.lane.b32.xlu0 %v1408, 19
      %v1429 = vpop.permute.xlu0 %1428
      %v1430 = vsel %vm661, %v1423, %v1425
      %v1431 = vsel %vm661, %v1425, %v1413
      %v1432 = vsel %vm661, %v1427, %v1429
      %v1433 = vsel %vm661, %v1429, %v1415
      %v1440 = vsel %vm661, %v1413, %v1423
      %v1441 = vsel %vm661, %v1415, %v1427
      %1442 = vrot.lane.b32.xlu0 %v1406, 18
      %v1443 = vpop.permute.xlu0 %1442
      %1444 = vrot.lane.b32.xlu0 %v1409, 18
      %v1445 = vpop.permute.xlu0 %1444
      %1448 = vrot.lane.b32.xlu0 %v1404, 18
      %v1449 = vpop.permute.xlu0 %1448
      %1450 = vrot.lane.b32.xlu0 %v1405, 18
      %v1451 = vpop.permute.xlu0 %1450
      %1452 = vrot.lane.b32.xlu0 %v1407, 18
      %v1453 = vpop.permute.xlu0 %1452
      %1454 = vrot.lane.b32.xlu0 %v1408, 18
      %v1455 = vpop.permute.xlu0 %1454
      %v1456 = vsel %vm714, %v1449, %v1451
      %v1457 = vsel %vm714, %v1451, %v1443
      %v1458 = vsel %vm714, %v1453, %v1455
      %v1459 = vsel %vm714, %v1455, %v1445
      %v1466 = vsel %vm714, %v1443, %v1449
      %v1467 = vsel %vm714, %v1445, %v1453
      %1468 = vrot.lane.b32.xlu0 %v1406, 17
      %v1469 = vpop.permute.xlu0 %1468
      %1470 = vrot.lane.b32.xlu0 %v1409, 17
      %v1471 = vpop.permute.xlu0 %1470
      %1474 = vrot.lane.b32.xlu0 %v1404, 17
      %v1475 = vpop.permute.xlu0 %1474
      %1476 = vrot.lane.b32.xlu0 %v1405, 17
      %v1477 = vpop.permute.xlu0 %1476
      %1478 = vrot.lane.b32.xlu0 %v1407, 17
      %v1479 = vpop.permute.xlu0 %1478
      %1480 = vrot.lane.b32.xlu0 %v1408, 17
      %v1481 = vpop.permute.xlu0 %1480
      %v1482 = vsel %vm767, %v1475, %v1477
      %v1483 = vsel %vm767, %v1477, %v1469
      %v1484 = vsel %vm767, %v1479, %v1481
      %v1485 = vsel %vm767, %v1481, %v1471
      %v1492 = vsel %vm767, %v1469, %v1475
      %v1493 = vsel %vm767, %v1471, %v1479
      %1494 = vrot.lane.b32.xlu0 %v1406, 1
      %v1495 = vpop.permute.xlu0 %1494
      %1496 = vrot.lane.b32.xlu0 %v1409, 1
      %v1497 = vpop.permute.xlu0 %1496
      %1500 = vrot.lane.b32.xlu0 %v1404, 1
      %v1501 = vpop.permute.xlu0 %1500
      %1502 = vrot.lane.b32.xlu0 %v1405, 1
      %v1503 = vpop.permute.xlu0 %1502
      %1504 = vrot.lane.b32.xlu0 %v1407, 1
      %v1505 = vpop.permute.xlu0 %1504
      %1506 = vrot.lane.b32.xlu0 %v1408, 1
      %v1507 = vpop.permute.xlu0 %1506
      %v1508 = vsel %vm820, %v1501, %v1503
      %v1509 = vsel %vm820, %v1503, %v1495
      %v1510 = vsel %vm820, %v1505, %v1507
      %v1511 = vsel %vm820, %v1507, %v1497
      %v1518 = vsel %vm820, %v1495, %v1501
      %v1519 = vsel %vm820, %v1497, %v1505
      %1520 = vrot.lane.b32.xlu0 %v1404, 127
      %v1521 = vpop.permute.xlu0 %1520
      %1522 = vrot.lane.b32.xlu0 %v1405, 127
      %v1523 = vpop.permute.xlu0 %1522
      %1524 = vrot.lane.b32.xlu0 %v1406, 127
      %v1525 = vpop.permute.xlu0 %1524
      %1526 = vrot.lane.b32.xlu0 %v1407, 127
      %v1527 = vpop.permute.xlu0 %1526
      %1528 = vrot.lane.b32.xlu0 %v1408, 127
      %v1529 = vpop.permute.xlu0 %1528
      %1530 = vrot.lane.b32.xlu0 %v1409, 127
      %v1531 = vpop.permute.xlu0 %1530
      %v1532 = vsel %vm869, %v1521, %v1523
      %v1533 = vsel %vm869, %v1523, %v1525
      %v1534 = vsel %vm869, %v1527, %v1529
      %v1535 = vsel %vm869, %v1529, %v1531
      %v1544 = vsel %vm869, %v1525, %v1521
      %v1545 = vsel %vm869, %v1531, %v1527
      %1546 = vrot.lane.b32.xlu0 %v1404, 111
      %v1547 = vpop.permute.xlu0 %1546
      %1548 = vrot.lane.b32.xlu0 %v1405, 111
      %v1549 = vpop.permute.xlu0 %1548
      %1550 = vrot.lane.b32.xlu0 %v1406, 111
      %v1551 = vpop.permute.xlu0 %1550
      %1552 = vrot.lane.b32.xlu0 %v1407, 111
      %v1553 = vpop.permute.xlu0 %1552
      %1554 = vrot.lane.b32.xlu0 %v1408, 111
      %v1555 = vpop.permute.xlu0 %1554
      %1556 = vrot.lane.b32.xlu0 %v1409, 111
      %v1557 = vpop.permute.xlu0 %1556
      %v1558 = vsel %vm922, %v1547, %v1549
      %v1559 = vsel %vm922, %v1549, %v1551
      %v1560 = vsel %vm922, %v1553, %v1555
      %v1561 = vsel %vm922, %v1555, %v1557
      %v1570 = vsel %vm922, %v1551, %v1547
      %v1571 = vsel %vm922, %v1557, %v1553
      %1572 = vrot.lane.b32.xlu0 %v1404, 110
      %v1573 = vpop.permute.xlu0 %1572
      %1574 = vrot.lane.b32.xlu0 %v1405, 110
      %v1575 = vpop.permute.xlu0 %1574
      %1576 = vrot.lane.b32.xlu0 %v1406, 110
      %v1577 = vpop.permute.xlu0 %1576
      %1578 = vrot.lane.b32.xlu0 %v1407, 110
      %v1579 = vpop.permute.xlu0 %1578
      %1580 = vrot.lane.b32.xlu0 %v1408, 110
      %v1581 = vpop.permute.xlu0 %1580
      %1582 = vrot.lane.b32.xlu0 %v1409, 110
      %v1583 = vpop.permute.xlu0 %1582
      %v1584 = vsel %vm975, %v1573, %v1575
      %v1585 = vsel %vm975, %v1575, %v1577
      %v1586 = vsel %vm975, %v1579, %v1581
      %v1587 = vsel %vm975, %v1581, %v1583
      %v1596 = vsel %vm975, %v1577, %v1573
      %v1597 = vsel %vm975, %v1583, %v1579
      %1598 = vrot.lane.b32.xlu0 %v1404, 109
      %v1599 = vpop.permute.xlu0 %1598
      %1600 = vrot.lane.b32.xlu0 %v1405, 109
      %v1601 = vpop.permute.xlu0 %1600
      %1602 = vrot.lane.b32.xlu0 %v1406, 109
      %v1603 = vpop.permute.xlu0 %1602
      %1604 = vrot.lane.b32.xlu0 %v1407, 109
      %v1605 = vpop.permute.xlu0 %1604
      %1606 = vrot.lane.b32.xlu0 %v1408, 109
      %v1607 = vpop.permute.xlu0 %1606
      %1608 = vrot.lane.b32.xlu0 %v1409, 109
      %v1609 = vpop.permute.xlu0 %1608
      %v1610 = vsel %vm1028, %v1599, %v1601
      %v1611 = vsel %vm1028, %v1601, %v1603
      %v1612 = vsel %vm1028, %v1605, %v1607
      %v1613 = vsel %vm1028, %v1607, %v1609
      %v1622 = vsel %vm1028, %v1603, %v1599
      %v1623 = vsel %vm1028, %v1609, %v1605
      %v1624 = vld [vmem:[%s5] sm:$0xff]
      %v1625 = vld [vmem:[%s5 + $0x8] sm:$0xff]
      %v1626 = vld [vmem:[%s6] sm:$0xff]
      %1628 = vset.pattern.permute.xlu0 0
      %1629 = vperm.xlu0 %1628, %v1626
      %v1630 = vpop.permute.xlu0 %1629
      %vm1632 = vcmask 130048
      %v1634 = vsel %vm1632, %v1625, 0
      %1636 = vmatprep.subr.mxu0 %v1430
      %1637 = vmatpush1.msra.mxu0 %v1440
      %1638 = vmatprep.subr.mxu0 %v1432
      %1639 = vmatpush1.msra.mxu0 %v1441
      %1640 = vmatprep.subr.mxu0 %v1456
      %1641 = vmatpush1.msra.mxu0 %v1466
      %1642 = vmatprep.subr.mxu0 %v1458
      %1643 = vmatpush1.msra.mxu0 %v1467
      %1644 = vmatprep.subr.mxu0 %v1482
      %1645 = vmatpush1.msra.mxu0 %v1492
      %1646 = vmatprep.subr.mxu0 %v1484
      %1647 = vmatpush1.msra.mxu0 %v1493
      %1648 = vmatprep.subr.mxu0 %v1508
      %1649 = vmatpush1.msra.mxu0 %v1518
      %1650 = vmatprep.subr.mxu0 %v1510
      %1651 = vmatpush1.msra.mxu0 %v1519
      %1652 = vmatprep.subr.mxu0 %v1405
      %1653 = vmatpush1.msra.mxu0 %v1404
      %1654 = vmatprep.subr.mxu0 %v1408
      %1655 = vmatpush1.msra.mxu0 %v1407
      %1656 = vmatprep.subr.mxu0 %v1533
      %1657 = vmatpush1.msra.mxu0 %v1532
      %1658 = vmatprep.subr.mxu0 %v1535
      %1659 = vmatpush1.msra.mxu0 %v1534
      %1660 = vmatprep.subr.mxu0 %v1559
      %1661 = vmatpush1.msra.mxu0 %v1558
      %1662 = vmatprep.subr.mxu0 %v1561
      %1663 = vmatpush1.msra.mxu0 %v1560
      %1664 = vmatprep.subr.mxu0 %v1585
      %1665 = vmatpush1.msra.mxu0 %v1584
      %1666 = vmatprep.subr.mxu0 %v1587
      %1667 = vmatpush1.msra.mxu0 %v1586
      %1668 = vmatprep.subr.mxu0 %v1611
      %1669 = vmatpush1.msra.mxu0 %v1610
      %1670 = vmatprep.subr.mxu0 %v1613
      %1671 = vmatpush1.msra.mxu0 %v1612
      %1672 = vmatprep.subr.mxu0 0.0
      %1673 = vmatpush1.msra.mxu0 0.0
      %1674 = vmatprep.subr.mxu0 0.0
      %1675 = vmatpush1.msra.mxu0 0.0
      %1676 = vmatprep.subr.mxu0 0.0
      %1677 = vmatpush1.msra.mxu0 0.0
      %1678 = vmatprep.subr.mxu0 0.0
      %1679 = vmatpush1.msra.mxu0 0.0
      %1680 = vmatprep.subr.mxu0 0.0
      %1681 = vmatpush1.msra.mxu0 0.0
      %1682 = vmatprep.subr.mxu0 0.0
      %1683 = vmatpush1.msra.mxu0 0.0
      %1684 = vmatprep.subr.mxu0 0.0
      %1685 = vmatpush1.msra.mxu0 0.0
      %1686 = vmatprep.subr.mxu0 0.0
      %1687 = vmatpush1.msra.mxu0 0.0
      %1688 = vmatprep.subr.mxu0 0.0
      %1689 = vmatpush1.msra.mxu0 0.0
      %1690 = vmatprep.subr.mxu0 0.0
      %1691 = vmatpush1.msra.mxu0 0.0
      %1692 = vmatprep.subr.mxu0 0.0
      %1693 = vmatpush1.msra.mxu0 0.0
      %1694 = vmatprep.subr.mxu0 0.0
      %1695 = vmatpush1.msra.mxu0 0.0
      %1696 = vmatprep.subr.mxu0 0.0
      %1697 = vmatpush1.msra.mxu0 0.0
      %1698 = vmatprep.subr.mxu0 0.0
      %1699 = vmatpush1.msra.mxu0 0.0
      %1700 = vmatprep.mubr.f32.mxu0 %v1634
      %1701 = vmatmul.mubr.f32.gmra.mrb[0].mxu0 %v1624
      %v1702 = vpop.f32.mrb[0].mxu0
      %v1703 = vadd.f32 %v1630, %v1702
      %v1704 = vpop.f32.mrb[0].mxu0
      %v1705 = vadd.f32 %v1630, %v1704
      %1706 = vdwg.mxu0
      %1707 = vmatprep.subr.mxu0 0.0
      %1708 = vmatpush1.msra.mxu0 %v1431
      %1709 = vmatprep.subr.mxu0 0.0
      %1710 = vmatpush1.msra.mxu0 %v1433
      %1711 = vmatprep.subr.mxu0 0.0
      %1712 = vmatpush1.msra.mxu0 %v1457
      %1713 = vmatprep.subr.mxu0 0.0
      %1714 = vmatpush1.msra.mxu0 %v1459
      %1715 = vmatprep.subr.mxu0 0.0
      %1716 = vmatpush1.msra.mxu0 %v1483
      %1717 = vmatprep.subr.mxu0 0.0
      %1718 = vmatpush1.msra.mxu0 %v1485
      %1719 = vmatprep.subr.mxu0 0.0
      %1720 = vmatpush1.msra.mxu0 %v1509
      %1721 = vmatprep.subr.mxu0 0.0
      %1722 = vmatpush1.msra.mxu0 %v1511
      %1723 = vmatprep.subr.mxu0 0.0
      %1724 = vmatpush1.msra.mxu0 %v1406
      %1725 = vmatprep.subr.mxu0 0.0
      %1726 = vmatpush1.msra.mxu0 %v1409
      %1727 = vmatprep.subr.mxu0 0.0
      %1728 = vmatpush1.msra.mxu0 %v1544
      %1729 = vmatprep.subr.mxu0 0.0
      %1730 = vmatpush1.msra.mxu0 %v1545
      %1731 = vmatprep.subr.mxu0 0.0
      %1732 = vmatpush1.msra.mxu0 %v1570
      %1733 = vmatprep.subr.mxu0 0.0
      %1734 = vmatpush1.msra.mxu0 %v1571
      %1735 = vmatprep.subr.mxu0 0.0
      %1736 = vmatpush1.msra.mxu0 %v1596
      %1737 = vmatprep.subr.mxu0 0.0
      %1738 = vmatpush1.msra.mxu0 %v1597
      %1739 = vmatprep.subr.mxu0 0.0
      %1740 = vmatpush1.msra.mxu0 %v1622
      %1741 = vmatprep.subr.mxu0 0.0
      %1742 = vmatpush1.msra.mxu0 %v1623
      %1743 = vmatprep.subr.mxu0 0.0
      %1744 = vmatpush1.msra.mxu0 0.0
      %1745 = vmatprep.subr.mxu0 0.0
      %1746 = vmatpush1.msra.mxu0 0.0
      %1747 = vmatprep.subr.mxu0 0.0
      %1748 = vmatpush1.msra.mxu0 0.0
      %1749 = vmatprep.subr.mxu0 0.0
      %1750 = vmatpush1.msra.mxu0 0.0
      %1751 = vmatprep.subr.mxu0 0.0
      %1752 = vmatpush1.msra.mxu0 0.0
      %1753 = vmatprep.subr.mxu0 0.0
      %1754 = vmatpush1.msra.mxu0 0.0
      %1755 = vmatprep.subr.mxu0 0.0
      %1756 = vmatpush1.msra.mxu0 0.0
      %1757 = vmatprep.subr.mxu0 0.0
      %1758 = vmatpush1.msra.mxu0 0.0
      %1759 = vmatprep.subr.mxu0 0.0
      %1760 = vmatpush1.msra.mxu0 0.0
      %1761 = vmatprep.subr.mxu0 0.0
      %1762 = vmatpush1.msra.mxu0 0.0
      %1763 = vmatprep.subr.mxu0 0.0
      %1764 = vmatpush1.msra.mxu0 0.0
      %1765 = vmatprep.subr.mxu0 0.0
      %1766 = vmatpush1.msra.mxu0 0.0
      %1767 = vmatprep.subr.mxu0 0.0
      %1768 = vmatpush1.msra.mxu0 0.0
      %1769 = vmatprep.subr.mxu0 0.0
      %1770 = vmatpush1.msra.mxu0 0.0
      %1771 = vmatprep.mubr.f32.mxu0 %v1634
      %1772 = vmatmul.mubr.f32.gmra.mrb[0].mxu0 %v1624
      %v1773 = vpop.f32.mrb[0].mxu0
      %v1774 = vadd.f32 %v1630, %v1773
      %v1775 = vpop.f32.mrb[0].mxu0
      %1776 = vdwg.mxu0
      %1777 = vst [vmem:[%s305] sm:$0xff] %v1703
      %1778 = vst [vmem:[%s305 + $0x8] sm:$0xff] %v1705
      %1779 = vst [vmem:[%s305 + $0x10] sm:$0xff] %v1774
      %p1780 = scmp.lt.s32.totalorder %s19, 1
      %s1781 = scalar_select %p1780, %s19, 1
      %s1782 = smul.addr %s1781, 3
      %s1783 = smul.addr %s1782, 8
      %s1784 = scalar_lea.vmem %s8, %s1783
      // Predicated region
      $region53: #{small_mask_net.1} parent=51 // pred_check
        %p1785 = pneg %p210
      $region54: #{small_mask_net.1} parent=51 // pred_check_branch
        %1787 = sbr.rel (%p1785) target = $region56
      $region55: #{small_mask_net.1} parent=51 // pred_region
        _
      $region56: #{small_mask_net.1} parent=51 // pred_fallthru
        _
    $region52: #{small_mask_net.1} parent=5 // pred_fallthru
      _
    %p1788 = scmp.le.s32.totalorder 2, %s14
    // Predicated region
    $region57: #{small_mask_net.1} parent=5 // pred_check
      %p1789 = pneg %p1788
    $region58: #{small_mask_net.1} parent=5 // pred_check_branch
      %1791 = sbr.rel (%p1789) target = $region60
    $region59: #{small_mask_net.1} parent=5 // pred_region
      %s1792 = ssub.s32 %s14, 2
      // Predicated region
      $region61: #{small_mask_net.1} parent=59 // pred_check
        %p1793 = pneg %p216
      $region62: #{small_mask_net.1} parent=59 // pred_check_branch
        %1795 = sbr.rel (%p1793) target = $region64
      $region63: #{small_mask_net.1} parent=59 // pred_region
        %p1796 = scmp.lt.s32.totalorder %s20, 1
        %s1797 = scalar_select %p1796, %s20, 1
        %s1798 = smul.addr %s1797, 3
        %s1799 = smul.addr %s1798, 8
        %s1800 = scalar_lea.vmem %s8, %s1799
      $region64: #{small_mask_net.1} parent=59 // pred_fallthru
        _
    $region60: #{small_mask_net.1} parent=5 // pred_fallthru
      _
  $region6: #{small_mask_net.1} parent=0 // loop_footer
    %s18 = sadd.s32 1, %s14
  $region7: #{small_mask_net.1} parent=0 // loop_footer_branch
    %13 = sbr.rel target = $region3
  $region8: #{small_mask_net.1} parent=0 // loop_exit
    _

</llo_original>
